<compile_context>
chip_gen: v7x
topology: tpu7x:2x2x1
jax: 0.10.0
libtpu: 0.0.40
codegen_flags: <defaults>
</compile_context>

<pallas_src>
from functools import partial

import jax
import jax.numpy as jnp
from jax import lax
from jax.experimental import pallas as pl
from jax.experimental.pallas import tpu as pltpu


# ----------------------------------------------------------------------------
# Pallas kernel: one (2C+1, TP) pixel tile -> (C, TP) real and imag tiles.
# ----------------------------------------------------------------------------
def _frdb_kernel(C, G, x_ref, wx_ref, wh1_ref, wh2_ref, real_ref, imag_ref):
    G2 = 2 * G
    leaky = lambda v: jnp.where(v > 0, v, 0.1 * v)

    # x rows: [mag (C) ; pha (C) ; ones (1)]  ->  (2C+1, TP)
    x = x_ref[...]

    # One fused matmul feeding make_fdense#1, make_fdense#2 and the final conv
    # for BOTH branches (block-diagonal weights, bias folded via ones-row).
    px = jnp.dot(wx_ref[...], x, preferred_element_type=jnp.float32)      # (4G+2C, TP)
    h1 = leaky(px[:G2, :])                                                # (2G, TP)
    ph1 = jnp.dot(wh1_ref[...], h1, preferred_element_type=jnp.float32)   # (2G+2C, TP)
    h2 = leaky(px[G2:2 * G2, :] + ph1[:G2, :])                            # (2G, TP)
    out = (px[2 * G2:, :] + ph1[G2:, :]
           + jnp.dot(wh2_ref[...], h2, preferred_element_type=jnp.float32))  # (2C, TP)

    mag_o = out[:C, :]
    pha_o = out[C:, :]
    real_ref[...] = mag_o * jnp.cos(pha_o)
    imag_ref[...] = mag_o * jnp.sin(pha_o)


# ----------------------------------------------------------------------------
# Wrapper around pallas_call: grid = (batch, pixel tiles), no host pad/slice.
# ----------------------------------------------------------------------------
def frdb_pixel_kernel(xin, wx, wh1, wh2, C, G, tp=2048):
    N, Cin, P = xin.shape                       # Cin = 2C + 1, P = H * Wf

    # Pick a lane tile: multiple of 128, as large as sensible, never larger
    # than the pixel axis (a ragged last block is masked by Pallas).
    tp = max(128, (min(tp, 4096) // 128) * 128)
    tp_floor = (P // 128) * 128
    if tp_floor >= 128:
        tp = min(tp, tp_floor)
    else:
        tp = P                                  # tiny images: one full-row block

    grid = (N, pl.cdiv(P, tp))

    data_in_spec = pl.BlockSpec((None, Cin, tp), lambda n, t: (n, 0, t))
    data_out_spec = pl.BlockSpec((None, C, tp), lambda n, t: (n, 0, t))
    wspec = lambda w: pl.BlockSpec(w.shape, lambda n, t: (0, 0))

    real3, imag3 = pl.pallas_call(
        partial(_frdb_kernel, C, G),
        grid=grid,
        in_specs=[data_in_spec, wspec(wx), wspec(wh1), wspec(wh2)],
        out_specs=[data_out_spec, data_out_spec],
        out_shape=[jax.ShapeDtypeStruct((N, C, P), jnp.float32),
                   jax.ShapeDtypeStruct((N, C, P), jnp.float32)],
        compiler_params=pltpu.CompilerParams(
            dimension_semantics=("parallel", "parallel")),
    )(xin, wx, wh1, wh2)
    return real3, imag3


# ----------------------------------------------------------------------------
# Pack the per-branch (BN-folded) params into 3 block-diagonal matrices with
# biases folded in via an extra "ones" input row.
#   wx  : (4G+2C, 2C+1)  rows [W1f ; W2xf ; Wcxf], last column = biases
#   wh1 : (2G+2C, 2G)    rows [W2hf ; Wch1f]
#   wh2 : (2C,   2G)     Wch2f
# ----------------------------------------------------------------------------
def pack_frdb_weights(params, C, G):
    def branch_mats(prefix):
        w1 = params[prefix + 'w1'].T            # (G, C)
        b1 = params[prefix + 'b1'][0]           # (G,)
        w2 = params[prefix + 'w2'].T            # (G, C+G)
        b2 = params[prefix + 'b2'][0]           # (G,)
        wc = params[prefix + 'wc'].T            # (C, C+2G)
        return (w1, b1, w2[:, :C], w2[:, C:], b2,
                wc[:, :C], wc[:, C:C + G], wc[:, C + G:])

    mw1, mb1, mw2x, mw2h, mb2, mwcx, mwch1, mwch2 = branch_mats('m')
    pw1, pb1, pw2x, pw2h, pb2, pwcx, pwch1, pwch2 = branch_mats('p')

    def bdiag(a, b):
        return jnp.block([
            [a, jnp.zeros((a.shape[0], b.shape[1]), jnp.float32)],
            [jnp.zeros((b.shape[0], a.shape[1]), jnp.float32), b]])

    w1f = jnp.concatenate(
        [bdiag(mw1, pw1), jnp.concatenate([mb1, pb1])[:, None]], axis=1)
    w2xf = jnp.concatenate(
        [bdiag(mw2x, pw2x), jnp.concatenate([mb2, pb2])[:, None]], axis=1)
    wcxf = jnp.concatenate(
        [bdiag(mwcx, pwcx), jnp.zeros((2 * C, 1), jnp.float32)], axis=1)

    wx = jnp.concatenate([w1f, w2xf, wcxf], axis=0)                  # (4G+2C, 2C+1)
    wh1 = jnp.concatenate([bdiag(mw2h, pw2h), bdiag(mwch1, pwch1)], axis=0)
    wh2 = bdiag(mwch2, pwch2)
    return wx, wh1, wh2


# ----------------------------------------------------------------------------
# Full FRDB forward (FFT glue in plain JAX).
# ----------------------------------------------------------------------------
def frdb_forward(x, params, C, G):
    # TODO(synk): rfft2/irfft2 (and abs/angle) have no Pallas primitive; done with jnp.fft.
    N, Cc, H, W = x.shape
    xf = jnp.fft.rfft2(x, norm='backward')          # (N, C, H, Wf) complex64
    Wf = xf.shape[-1]
    P = H * Wf

    mag = jnp.abs(xf).reshape(N, Cc, P)
    pha = jnp.angle(xf).reshape(N, Cc, P)
    ones = jnp.ones((N, 1, P), jnp.float32)
    xin = jnp.concatenate([mag, pha, ones], axis=1)  # (N, 2C+1, P); fuses with abs/angle under jit

    wx, wh1, wh2 = pack_frdb_weights(params, C, G)
    real3, imag3 = frdb_pixel_kernel(xin, wx, wh1, wh2, C, G)

    x_out = lax.complex(real3, imag3).reshape(N, Cc, H, Wf)
    out = jnp.fft.irfft2(x_out, s=(H, W), norm='backward')
    return out + x


# ----------------------------------------------------------------------------
# Deterministic parameter init + BN folding (inference mode).
# ----------------------------------------------------------------------------
def init_params(key, C, G, eps=1e-5):
    ks = jax.random.split(key, 16)

    def conv_w(k, out_c, in_c):
        return 0.1 * jax.random.normal(k, (out_c, in_c), jnp.float32)

    def bn_params(k):
        k1, k2, k3, k4 = jax.random.split(k, 4)
        gamma = 1.0 + 0.1 * jax.random.normal(k1, (G,), jnp.float32)
        beta = 0.1 * jax.random.normal(k2, (G,), jnp.float32)
        mean = 0.1 * jax.random.normal(k3, (G,), jnp.float32)
        var = 1.0 + 0.1 * jax.random.uniform(k4, (G,), jnp.float32)
        return gamma, beta, mean, var

    def fold(w, bn):
        # conv (no bias) followed by inference-mode BN:
        #   y = gamma * (W x - mean) / sqrt(var + eps) + beta
        gamma, beta, mean, var = bn
        s = gamma / jnp.sqrt(var + eps)
        w_eff = (w * s[:, None]).T            # (in, out)
        b_eff = (beta - mean * s)[None, :]    # (1, out)
        return w_eff, b_eff

    params = {}
    # magnitude branch
    params['mw1'], params['mb1'] = fold(conv_w(ks[0], G, C), bn_params(ks[1]))
    params['mw2'], params['mb2'] = fold(conv_w(ks[2], G, C + G), bn_params(ks[3]))
    params['mwc'] = conv_w(ks[4], C, C + 2 * G).T          # (C+2G, C), no bias
    # phase branch
    params['pw1'], params['pb1'] = fold(conv_w(ks[5], G, C), bn_params(ks[6]))
    params['pw2'], params['pb2'] = fold(conv_w(ks[7], G, C + G), bn_params(ks[8]))
    params['pwc'] = conv_w(ks[9], C, C + 2 * G).T
    return params


# ----------------------------------------------------------------------------
# Pure-JAX reference (same folded params) for a correctness check.
# ----------------------------------------------------------------------------
def frdb_reference(x, params, C, G):
    N, Cc, H, W = x.shape
    xf = jnp.fft.rfft2(x, norm='backward')
    mag, pha = jnp.abs(xf), jnp.angle(xf)
    leaky = lambda t: jnp.where(t > 0, t, 0.1 * t)

    def conv1x1(u, w, b=None):               # w: (in, out)
        y = jnp.einsum('nchw,co->nohw', u, w)
        if b is not None:
            y = y + b.reshape(1, -1, 1, 1)
        return y

    def branch(v, w1, b1, w2, b2, wc):
        h1 = leaky(conv1x1(v, w1, b1[0]))
        v1 = jnp.concatenate([v, h1], axis=1)
        h2 = leaky(conv1x1(v1, w2, b2[0]))
        v2 = jnp.concatenate([v1, h2], axis=1)
        return conv1x1(v2, wc)

    mag_o = branch(mag, params['mw1'], params['mb1'],
                   params['mw2'], params['mb2'], params['mwc'])
    pha_o = branch(pha, params['pw1'], params['pb1'],
                   params['pw2'], params['pb2'], params['pwc'])
    x_out = mag_o * jnp.cos(pha_o) + 1j * mag_o * jnp.sin(pha_o)
    return jnp.fft.irfft2(x_out, s=(H, W), norm='backward') + x


if __name__ == "__main__":
    C, G = 4, 32                      # nChannels=4, growthRate=32, nDenselayer=2
    N, H, W = 2, 16, 16

    key = jax.random.PRNGKey(0)
    kx, kp = jax.random.split(key)
    x = jax.random.normal(kx, (N, C, H, W), jnp.float32)
    params = init_params(kp, C, G)

    fwd = jax.jit(partial(frdb_forward, C=C, G=G))
    ref_fn = jax.jit(partial(frdb_reference, C=C, G=G))

    out = jax.block_until_ready(fwd(x, params))
    ref = jax.block_until_ready(ref_fn(x, params))

    assert out.shape == (N, C, H, W)
    assert jnp.allclose(out, ref, atol=1e-3, rtol=1e-3), (
        float(jnp.max(jnp.abs(out - ref))))
    print("KERNEL_OK")
</pallas_src>

<mosaic_0001>
module attributes {stable_mosaic.version = 11 : i64} {
  func.func @_frdb_kernel(%arg0: i32, %arg1: i32, %arg2: memref<1x9x128xf32, #tpu.memory_space<vmem>>, %arg3: memref<136x9xf32, #tpu.memory_space<vmem>>, %arg4: memref<72x64xf32, #tpu.memory_space<vmem>>, %arg5: memref<8x64xf32, #tpu.memory_space<vmem>>, %arg6: memref<1x4x128xf32, #tpu.memory_space<vmem>>, %arg7: memref<1x4x128xf32, #tpu.memory_space<vmem>>) attributes {dimension_semantics = [#tpu.dimension_semantics<parallel>, #tpu.dimension_semantics<parallel>], iteration_bounds = array<i64: 2, 2>, scalar_prefetch = 0 : i64, scratch_operands = 0 : i64, tpu.core_type = #tpu.core_type<tc>, window_params = [{transform_indices = @transform_0, window_bounds = array<i64: 1, 9, 128>}, {pipeline_mode = #tpu.pipeline_mode<synchronous>, transform_indices = @transform_1, window_bounds = array<i64: 136, 9>}, {pipeline_mode = #tpu.pipeline_mode<synchronous>, transform_indices = @transform_2, window_bounds = array<i64: 72, 64>}, {pipeline_mode = #tpu.pipeline_mode<synchronous>, transform_indices = @transform_3, window_bounds = array<i64: 8, 64>}, {transform_indices = @transform_4, window_bounds = array<i64: 1, 4, 128>}, {transform_indices = @transform_5, window_bounds = array<i64: 1, 4, 128>}]} {
    %c0 = arith.constant 0 : index
    %c0_0 = arith.constant 0 : index
    %c0_1 = arith.constant 0 : index
    %0 = vector.load %arg2[%c0, %c0_0, %c0_1] : memref<1x9x128xf32, #tpu.memory_space<vmem>>, vector<1x9x128xf32>
    %1 = vector.shape_cast %0 : vector<1x9x128xf32> to vector<9x128xf32>
    %c0_2 = arith.constant 0 : index
    %c0_3 = arith.constant 0 : index
    %2 = vector.load %arg3[%c0_2, %c0_3] : memref<136x9xf32, #tpu.memory_space<vmem>>, vector<136x9xf32>
    %cst = arith.constant dense<0.000000e+00> : vector<136x128xf32>
    %3 = tpu.matmul %2, %1, %cst {dimension_numbers = #tpu.dot_dimension_numbers<[1], [0], [0], [1], [0, 0, 1, 1], [], []>} : vector<136x9xf32>, vector<9x128xf32>, vector<136x128xf32> -> vector<136x128xf32>
    %4 = vector.extract_strided_slice %3 {offsets = [0, 0], sizes = [64, 128], strides = [1, 1]} : vector<136x128xf32> to vector<64x128xf32>
    %cst_4 = arith.constant 0.000000e+00 : f32
    %5 = vector.broadcast %cst_4 : f32 to vector<64x128xf32>
    %6 = arith.cmpf ogt, %4, %5 : vector<64x128xf32>
    %cst_5 = arith.constant 1.000000e-01 : f32
    %7 = vector.broadcast %cst_5 : f32 to vector<64x128xf32>
    %8 = arith.mulf %7, %4 : vector<64x128xf32>
    %9 = arith.select %6, %4, %8 : vector<64x128xi1>, vector<64x128xf32>
    %c0_6 = arith.constant 0 : index
    %c0_7 = arith.constant 0 : index
    %10 = vector.load %arg4[%c0_6, %c0_7] : memref<72x64xf32, #tpu.memory_space<vmem>>, vector<72x64xf32>
    %cst_8 = arith.constant dense<0.000000e+00> : vector<72x128xf32>
    %11 = tpu.matmul %10, %9, %cst_8 {dimension_numbers = #tpu.dot_dimension_numbers<[1], [0], [0], [1], [0, 0, 1, 1], [], []>} : vector<72x64xf32>, vector<64x128xf32>, vector<72x128xf32> -> vector<72x128xf32>
    %12 = vector.extract_strided_slice %3 {offsets = [64, 0], sizes = [64, 128], strides = [1, 1]} : vector<136x128xf32> to vector<64x128xf32>
    %13 = vector.extract_strided_slice %11 {offsets = [0, 0], sizes = [64, 128], strides = [1, 1]} : vector<72x128xf32> to vector<64x128xf32>
    %14 = arith.addf %12, %13 : vector<64x128xf32>
    %cst_9 = arith.constant 0.000000e+00 : f32
    %15 = vector.broadcast %cst_9 : f32 to vector<64x128xf32>
    %16 = arith.cmpf ogt, %14, %15 : vector<64x128xf32>
    %cst_10 = arith.constant 1.000000e-01 : f32
    %17 = vector.broadcast %cst_10 : f32 to vector<64x128xf32>
    %18 = arith.mulf %17, %14 : vector<64x128xf32>
    %19 = arith.select %16, %14, %18 : vector<64x128xi1>, vector<64x128xf32>
    %20 = vector.extract_strided_slice %3 {offsets = [128, 0], sizes = [8, 128], strides = [1, 1]} : vector<136x128xf32> to vector<8x128xf32>
    %21 = vector.extract_strided_slice %11 {offsets = [64, 0], sizes = [8, 128], strides = [1, 1]} : vector<72x128xf32> to vector<8x128xf32>
    %22 = arith.addf %20, %21 : vector<8x128xf32>
    %c0_11 = arith.constant 0 : index
    %c0_12 = arith.constant 0 : index
    %23 = vector.load %arg5[%c0_11, %c0_12] : memref<8x64xf32, #tpu.memory_space<vmem>>, vector<8x64xf32>
    %cst_13 = arith.constant dense<0.000000e+00> : vector<8x128xf32>
    %24 = tpu.matmul %23, %19, %cst_13 {dimension_numbers = #tpu.dot_dimension_numbers<[1], [0], [0], [1], [0, 0, 1, 1], [], []>} : vector<8x64xf32>, vector<64x128xf32>, vector<8x128xf32> -> vector<8x128xf32>
    %25 = arith.addf %22, %24 : vector<8x128xf32>
    %26 = vector.extract_strided_slice %25 {offsets = [0, 0], sizes = [4, 128], strides = [1, 1]} : vector<8x128xf32> to vector<4x128xf32>
    %27 = vector.extract_strided_slice %25 {offsets = [4, 0], sizes = [4, 128], strides = [1, 1]} : vector<8x128xf32> to vector<4x128xf32>
    %28 = math.cos %27 : vector<4x128xf32>
    %29 = arith.mulf %26, %28 : vector<4x128xf32>
    %c0_14 = arith.constant 0 : index
    %c0_15 = arith.constant 0 : index
    %c0_16 = arith.constant 0 : index
    %30 = vector.load %arg6[%c0_14, %c0_15, %c0_16] : memref<1x4x128xf32, #tpu.memory_space<vmem>>, vector<1x4x128xf32>
    %31 = vector.shape_cast %30 : vector<1x4x128xf32> to vector<4x128xf32>
    %32 = vector.shape_cast %29 : vector<4x128xf32> to vector<1x4x128xf32>
    tpu.vector_store %arg6[%c0_14, %c0_15, %c0_16], %32 {strides = array<i32>} : memref<1x4x128xf32, #tpu.memory_space<vmem>>, vector<1x4x128xf32>,
    %33 = math.sin %27 : vector<4x128xf32>
    %34 = arith.mulf %26, %33 : vector<4x128xf32>
    %c0_17 = arith.constant 0 : index
    %c0_18 = arith.constant 0 : index
    %c0_19 = arith.constant 0 : index
    %35 = vector.load %arg7[%c0_17, %c0_18, %c0_19] : memref<1x4x128xf32, #tpu.memory_space<vmem>>, vector<1x4x128xf32>
    %36 = vector.shape_cast %35 : vector<1x4x128xf32> to vector<4x128xf32>
    %37 = vector.shape_cast %34 : vector<4x128xf32> to vector<1x4x128xf32>
    tpu.vector_store %arg7[%c0_17, %c0_18, %c0_19], %37 {strides = array<i32>} : memref<1x4x128xf32, #tpu.memory_space<vmem>>, vector<1x4x128xf32>,
    return
  }
  func.func @transform_0(%arg0: i32, %arg1: i32) -> (i32, i32, i32) {
    %c0_i32 = arith.constant 0 : i32
    %c0_i32_0 = arith.constant 0 : i32
    return %arg0, %c0_i32, %arg1 : i32, i32, i32
  }
  func.func @transform_1(%arg0: i32, %arg1: i32) -> (i32, i32) {
    %c0_i32 = arith.constant 0 : i32
    %c0_i32_0 = arith.constant 0 : i32
    %c0_i32_1 = arith.constant 0 : i32
    return %c0_i32, %c0_i32_0 : i32, i32
  }
  func.func @transform_2(%arg0: i32, %arg1: i32) -> (i32, i32) {
    %c0_i32 = arith.constant 0 : i32
    %c0_i32_0 = arith.constant 0 : i32
    %c0_i32_1 = arith.constant 0 : i32
    return %c0_i32, %c0_i32_0 : i32, i32
  }
  func.func @transform_3(%arg0: i32, %arg1: i32) -> (i32, i32) {
    %c0_i32 = arith.constant 0 : i32
    %c0_i32_0 = arith.constant 0 : i32
    %c0_i32_1 = arith.constant 0 : i32
    return %c0_i32, %c0_i32_0 : i32, i32
  }
  func.func @transform_4(%arg0: i32, %arg1: i32) -> (i32, i32, i32) {
    %c0_i32 = arith.constant 0 : i32
    %c0_i32_0 = arith.constant 0 : i32
    return %arg0, %c0_i32, %arg1 : i32, i32, i32
  }
  func.func @transform_5(%arg0: i32, %arg1: i32) -> (i32, i32, i32) {
    %c0_i32 = arith.constant 0 : i32
    %c0_i32_0 = arith.constant 0 : i32
    return %arg0, %c0_i32, %arg1 : i32, i32, i32
  }
}

</mosaic_0001>

<llo_original>
// kernel: reverse.0
$region0: #{reverse.0}
  %s0 = inlined_call_operand.vmem [shape: f32[2,4,16,7], index: 0, kind: input, shape index: {}]
  %s1 = inlined_call_operand.vmem [shape: f32[2,4,16,7], index: 1, kind: output, shape index: {}]
  $region1: #{reverse.0} parent=0
    #allocation0 [shape = 'u8[65536]{0}', space=vmem, size = 0x10000, scoped, tag = 'operand span for operand 0']
    #allocation1 [shape = 'u8[32768]{0}', space=vmem, size = 0x8000, scoped, tag = 'operand span for operand 1']
    %s2 = scalar_lea.vmem [#allocation0], 8
    // Predicated region
    $region2: #{reverse.0} parent=1 // pred_check
      _
    $region3: #{reverse.0} parent=1 // pred_check_branch
      %4 = sbr.rel (0) target = $region5
    $region4: #{reverse.0} parent=1 // pred_region
      // Predicated region
      $region6: #{reverse.0} parent=4 // pred_check
        _
      $region7: #{reverse.0} parent=4 // pred_check_branch
        %6 = sbr.rel (0) target = $region9
      $region8: #{reverse.0} parent=4 // pred_region
        // Predicated region
        $region21: #{reverse.0} parent=8 // pred_check
          _
        $region22: #{reverse.0} parent=8 // pred_check_branch
          %35 = sbr.rel (0) target = $region24
        $region23: #{reverse.0} parent=8 // pred_region
          loop: start=0, step=1, limit=1
          $region25: #{reverse.0} parent=23 // loop_pre_header
            _
          $region26: #{reverse.0} parent=23 // loop_header
            %s37 = sphi 0, %s41
            %p38 = scmp.ge.s32.totalorder %s37, 1
            %s42 = sphi %s0, %s0
            %s43 = sphi %s2, %s2
          $region27: #{reverse.0} parent=23 // loop_header_branch
            %40 = sbr.rel (%p38) target = $region31
          $region28: #{reverse.0} parent=23 // loop_body
            %v44 = vld [vmem:[%s42] sm:$0xff]
            %45 = vst [vmem:[%s43] sm:$0xff] %v44
            %v46 = vld [vmem:[%s42 + $0x8] sm:$0xff]
            %47 = vst [vmem:[%s43 + $0x10] sm:$0xff] %v46
            %v48 = vld [vmem:[%s42 + $0x10] sm:$0xff]
            %49 = vst [vmem:[%s43 + $0x20] sm:$0xff] %v48
            %v50 = vld [vmem:[%s42 + $0x18] sm:$0xff]
            %51 = vst [vmem:[%s43 + $0x30] sm:$0xff] %v50
            %v52 = vld [vmem:[%s42 + $0x20] sm:$0xff]
            %53 = vst [vmem:[%s43 + $0x40] sm:$0xff] %v52
            %v54 = vld [vmem:[%s42 + $0x28] sm:$0xff]
            %55 = vst [vmem:[%s43 + $0x50] sm:$0xff] %v54
            %v56 = vld [vmem:[%s42 + $0x30] sm:$0xff]
            %57 = vst [vmem:[%s43 + $0x60] sm:$0xff] %v56
            %v58 = vld [vmem:[%s42 + $0x38] sm:$0xff]
            %59 = vst [vmem:[%s43 + $0x70] sm:$0xff] %v58
          $region29: #{reverse.0} parent=23 // loop_footer
            %s41 = sadd.s32 1, %s37
          $region30: #{reverse.0} parent=23 // loop_footer_branch
            %36 = sbr.rel target = $region26
          $region31: #{reverse.0} parent=23 // loop_exit
            _
        $region24: #{reverse.0} parent=8 // pred_fallthru
          _
        // Predicated region
        $region32: #{reverse.0} parent=8 // pred_check
          _
        $region33: #{reverse.0} parent=8 // pred_check_branch
          %61 = sbr.rel target = $region35
        $region34: #{reverse.0} parent=8 // pred_region
          _
        $region35: #{reverse.0} parent=8 // pred_fallthru
          _
      $region9: #{reverse.0} parent=4 // pred_fallthru
        _
      // Predicated region
      $region10: #{reverse.0} parent=4 // pred_check
        _
      $region11: #{reverse.0} parent=4 // pred_check_branch
        %8 = sbr.rel target = $region13
      $region12: #{reverse.0} parent=4 // pred_region
        loop: start=0, step=1, limit=1
        $region14: #{reverse.0} parent=12 // loop_pre_header
          _
        $region15: #{reverse.0} parent=12 // loop_header
          %s11 = sphi 0, %s15
          %p12 = scmp.ge.s32.totalorder %s11, 1
          %s16 = sphi %s0, %s0
          %s17 = sphi %s2, %s2
        $region16: #{reverse.0} parent=12 // loop_header_branch
          %14 = sbr.rel (%p12) target = $region20
        $region17: #{reverse.0} parent=12 // loop_body
          %v18 = vld [vmem:[%s16] sm:$0xff]
          %19 = vst [vmem:[%s17] sm:$0xff] %v18
          %v20 = vld [vmem:[%s16 + $0x8] sm:$0xff]
          %21 = vst [vmem:[%s17 + $0x10] sm:$0xff] %v20
          %v22 = vld [vmem:[%s16 + $0x10] sm:$0xff]
          %23 = vst [vmem:[%s17 + $0x20] sm:$0xff] %v22
          %v24 = vld [vmem:[%s16 + $0x18] sm:$0xff]
          %25 = vst [vmem:[%s17 + $0x30] sm:$0xff] %v24
          %v26 = vld [vmem:[%s16 + $0x20] sm:$0xff]
          %27 = vst [vmem:[%s17 + $0x40] sm:$0xff] %v26
          %v28 = vld [vmem:[%s16 + $0x28] sm:$0xff]
          %29 = vst [vmem:[%s17 + $0x50] sm:$0xff] %v28
          %v30 = vld [vmem:[%s16 + $0x30] sm:$0xff]
          %31 = vst [vmem:[%s17 + $0x60] sm:$0xff] %v30
          %v32 = vld [vmem:[%s16 + $0x38] sm:$0xff]
          %33 = vst [vmem:[%s17 + $0x70] sm:$0xff] %v32
        $region18: #{reverse.0} parent=12 // loop_footer
          %s15 = sadd.s32 1, %s11
        $region19: #{reverse.0} parent=12 // loop_footer_branch
          %10 = sbr.rel target = $region15
        $region20: #{reverse.0} parent=12 // loop_exit
          _
      $region13: #{reverse.0} parent=4 // pred_fallthru
        _
    $region5: #{reverse.0} parent=1 // pred_fallthru
      _
    %62 = vnop
    %s63 = scalar_lea.vmem [#allocation0], 7
    %v64 = vld [vmem:[%s63] ss:$-1 sm:$0xff]
    %v65 = vrot.slane %v64, 1
    %66 = vst [vmem:[#allocation1] sm:$0xff] %v65
    %s67 = scalar_lea.vmem [#allocation0], 8
    %s68 = scalar_lea.vmem %s67, 7 [#allocation0]
    %v69 = vld [vmem:[%s68] ss:$-1 sm:$0xff]
    %v70 = vrot.slane %v69, 1
    %v71 = vlaneseq
    %v72 = vshrl.u32 %v71, 7
    %vm73 = vcmp.lt.s32.totalorder %v72, 7
    %74 = vst.msk [vmem:[#allocation1] sm:$0xff] %vm73, %v70
    %s75 = scalar_lea.vmem [#allocation1], 8
    %s76 = scalar_lea.vmem [#allocation0], 16
    %s77 = scalar_lea.vmem %s76, 7 [#allocation0]
    %v78 = vld [vmem:[%s77] ss:$-1 sm:$0xff]
    %v79 = vrot.slane %v78, 1
    %80 = vst [vmem:[%s75] sm:$0xff] %v79
    %s81 = scalar_lea.vmem %s76, 8 [#allocation0]
    %s82 = scalar_lea.vmem %s81, 7 [#allocation0]
    %v83 = vld [vmem:[%s82] ss:$-1 sm:$0xff]
    %v84 = vrot.slane %v83, 1
    %v85 = vlaneseq
    %v86 = vshrl.u32 %v85, 7
    %vm87 = vcmp.lt.s32.totalorder %v86, 7
    %88 = vst.msk [vmem:[%s75] sm:$0xff] %vm87, %v84
    %s89 = scalar_lea.vmem [#allocation1], 16
    %s90 = scalar_lea.vmem [#allocation0], 32
    %s91 = scalar_lea.vmem %s90, 7 [#allocation0]
    %v92 = vld [vmem:[%s91] ss:$-1 sm:$0xff]
    %v93 = vrot.slane %v92, 1
    %94 = vst [vmem:[%s89] sm:$0xff] %v93
    %s95 = scalar_lea.vmem %s90, 8 [#allocation0]
    %s96 = scalar_lea.vmem %s95, 7 [#allocation0]
    %v97 = vld [vmem:[%s96] ss:$-1 sm:$0xff]
    %v98 = vrot.slane %v97, 1
    %v99 = vlaneseq
    %v100 = vshrl.u32 %v99, 7
    %vm101 = vcmp.lt.s32.totalorder %v100, 7
    %102 = vst.msk [vmem:[%s89] sm:$0xff] %vm101, %v98
    %s103 = scalar_lea.vmem [#allocation1], 24
    %s104 = scalar_lea.vmem [#allocation0], 48
    %s105 = scalar_lea.vmem %s104, 7 [#allocation0]
    %v106 = vld [vmem:[%s105] ss:$-1 sm:$0xff]
    %v107 = vrot.slane %v106, 1
    %108 = vst [vmem:[%s103] sm:$0xff] %v107
    %s109 = scalar_lea.vmem %s104, 8 [#allocation0]
    %s110 = scalar_lea.vmem %s109, 7 [#allocation0]
    %v111 = vld [vmem:[%s110] ss:$-1 sm:$0xff]
    %v112 = vrot.slane %v111, 1
    %v113 = vlaneseq
    %v114 = vshrl.u32 %v113, 7
    %vm115 = vcmp.lt.s32.totalorder %v114, 7
    %116 = vst.msk [vmem:[%s103] sm:$0xff] %vm115, %v112
    %s117 = scalar_lea.vmem [#allocation1], 32
    %s118 = scalar_lea.vmem [#allocation0], 64
    %s119 = scalar_lea.vmem %s118, 7 [#allocation0]
    %v120 = vld [vmem:[%s119] ss:$-1 sm:$0xff]
    %v121 = vrot.slane %v120, 1
    %122 = vst [vmem:[%s117] sm:$0xff] %v121
    %s123 = scalar_lea.vmem %s118, 8 [#allocation0]
    %s124 = scalar_lea.vmem %s123, 7 [#allocation0]
    %v125 = vld [vmem:[%s124] ss:$-1 sm:$0xff]
    %v126 = vrot.slane %v125, 1
    %v127 = vlaneseq
    %v128 = vshrl.u32 %v127, 7
    %vm129 = vcmp.lt.s32.totalorder %v128, 7
    %130 = vst.msk [vmem:[%s117] sm:$0xff] %vm129, %v126
    %s131 = scalar_lea.vmem [#allocation1], 40
    %s132 = scalar_lea.vmem [#allocation0], 80
    %s133 = scalar_lea.vmem %s132, 7 [#allocation0]
    %v134 = vld [vmem:[%s133] ss:$-1 sm:$0xff]
    %v135 = vrot.slane %v134, 1
    %136 = vst [vmem:[%s131] sm:$0xff] %v135
    %s137 = scalar_lea.vmem %s132, 8 [#allocation0]
    %s138 = scalar_lea.vmem %s137, 7 [#allocation0]
    %v139 = vld [vmem:[%s138] ss:$-1 sm:$0xff]
    %v140 = vrot.slane %v139, 1
    %v141 = vlaneseq
    %v142 = vshrl.u32 %v141, 7
    %vm143 = vcmp.lt.s32.totalorder %v142, 7
    %144 = vst.msk [vmem:[%s131] sm:$0xff] %vm143, %v140
    %s145 = scalar_lea.vmem [#allocation1], 48
    %s146 = scalar_lea.vmem [#allocation0], 96
    %s147 = scalar_lea.vmem %s146, 7 [#allocation0]
    %v148 = vld [vmem:[%s147] ss:$-1 sm:$0xff]
    %v149 = vrot.slane %v148, 1
    %150 = vst [vmem:[%s145] sm:$0xff] %v149
    %s151 = scalar_lea.vmem %s146, 8 [#allocation0]
    %s152 = scalar_lea.vmem %s151, 7 [#allocation0]
    %v153 = vld [vmem:[%s152] ss:$-1 sm:$0xff]
    %v154 = vrot.slane %v153, 1
    %v155 = vlaneseq
    %v156 = vshrl.u32 %v155, 7
    %vm157 = vcmp.lt.s32.totalorder %v156, 7
    %158 = vst.msk [vmem:[%s145] sm:$0xff] %vm157, %v154
    %s159 = scalar_lea.vmem [#allocation1], 56
    %s160 = scalar_lea.vmem [#allocation0], 112
    %s161 = scalar_lea.vmem %s160, 7 [#allocation0]
    %v162 = vld [vmem:[%s161] ss:$-1 sm:$0xff]
    %v163 = vrot.slane %v162, 1
    %164 = vst [vmem:[%s159] sm:$0xff] %v163
    %s165 = scalar_lea.vmem %s160, 8 [#allocation0]
    %s166 = scalar_lea.vmem %s165, 7 [#allocation0]
    %v167 = vld [vmem:[%s166] ss:$-1 sm:$0xff]
    %v168 = vrot.slane %v167, 1
    %v169 = vlaneseq
    %v170 = vshrl.u32 %v169, 7
    %vm171 = vcmp.lt.s32.totalorder %v170, 7
    %172 = vst.msk [vmem:[%s159] sm:$0xff] %vm171, %v168
    // Predicated region
    $region36: #{reverse.0} parent=1 // pred_check
      _
    $region37: #{reverse.0} parent=1 // pred_check_branch
      %174 = sbr.rel (0) target = $region39
    $region38: #{reverse.0} parent=1 // pred_region
      // Predicated region
      $region40: #{reverse.0} parent=38 // pred_check
        _
      $region41: #{reverse.0} parent=38 // pred_check_branch
        %176 = sbr.rel (0) target = $region43
      $region42: #{reverse.0} parent=38 // pred_region
        // Predicated region
        $region55: #{reverse.0} parent=42 // pred_check
          _
        $region56: #{reverse.0} parent=42 // pred_check_branch
          %205 = sbr.rel (0) target = $region58
        $region57: #{reverse.0} parent=42 // pred_region
          loop: start=0, step=1, limit=1
          $region59: #{reverse.0} parent=57 // loop_pre_header
            _
          $region60: #{reverse.0} parent=57 // loop_header
            %s207 = sphi 0, %s211
            %p208 = scmp.ge.s32.totalorder %s207, 1
            %s212 = sphi [#allocation1], [#allocation1]
            %s213 = sphi %s1, %s1
          $region61: #{reverse.0} parent=57 // loop_header_branch
            %210 = sbr.rel (%p208) target = $region65
          $region62: #{reverse.0} parent=57 // loop_body
            %v214 = vld [vmem:[%s212] sm:$0xff]
            %215 = vst [vmem:[%s213] sm:$0xff] %v214
            %v216 = vld [vmem:[%s212 + $0x8] sm:$0xff]
            %217 = vst [vmem:[%s213 + $0x8] sm:$0xff] %v216
            %v218 = vld [vmem:[%s212 + $0x10] sm:$0xff]
            %219 = vst [vmem:[%s213 + $0x10] sm:$0xff] %v218
            %v220 = vld [vmem:[%s212 + $0x18] sm:$0xff]
            %221 = vst [vmem:[%s213 + $0x18] sm:$0xff] %v220
            %v222 = vld [vmem:[%s212 + $0x20] sm:$0xff]
            %223 = vst [vmem:[%s213 + $0x20] sm:$0xff] %v222
            %v224 = vld [vmem:[%s212 + $0x28] sm:$0xff]
            %225 = vst [vmem:[%s213 + $0x28] sm:$0xff] %v224
            %v226 = vld [vmem:[%s212 + $0x30] sm:$0xff]
            %227 = vst [vmem:[%s213 + $0x30] sm:$0xff] %v226
            %v228 = vld [vmem:[%s212 + $0x38] sm:$0xff]
            %229 = vst [vmem:[%s213 + $0x38] sm:$0xff] %v228
          $region63: #{reverse.0} parent=57 // loop_footer
            %s211 = sadd.s32 1, %s207
          $region64: #{reverse.0} parent=57 // loop_footer_branch
            %206 = sbr.rel target = $region60
          $region65: #{reverse.0} parent=57 // loop_exit
            _
        $region58: #{reverse.0} parent=42 // pred_fallthru
          _
        // Predicated region
        $region66: #{reverse.0} parent=42 // pred_check
          _
        $region67: #{reverse.0} parent=42 // pred_check_branch
          %231 = sbr.rel target = $region69
        $region68: #{reverse.0} parent=42 // pred_region
          _
        $region69: #{reverse.0} parent=42 // pred_fallthru
          _
      $region43: #{reverse.0} parent=38 // pred_fallthru
        _
      // Predicated region
      $region44: #{reverse.0} parent=38 // pred_check
        _
      $region45: #{reverse.0} parent=38 // pred_check_branch
        %178 = sbr.rel target = $region47
      $region46: #{reverse.0} parent=38 // pred_region
        loop: start=0, step=1, limit=1
        $region48: #{reverse.0} parent=46 // loop_pre_header
          _
        $region49: #{reverse.0} parent=46 // loop_header
          %s181 = sphi 0, %s185
          %p182 = scmp.ge.s32.totalorder %s181, 1
          %s186 = sphi [#allocation1], [#allocation1]
          %s187 = sphi %s1, %s1
        $region50: #{reverse.0} parent=46 // loop_header_branch
          %184 = sbr.rel (%p182) target = $region54
        $region51: #{reverse.0} parent=46 // loop_body
          %v188 = vld [vmem:[%s186] sm:$0xff]
          %189 = vst [vmem:[%s187] sm:$0xff] %v188
          %v190 = vld [vmem:[%s186 + $0x8] sm:$0xff]
          %191 = vst [vmem:[%s187 + $0x8] sm:$0xff] %v190
          %v192 = vld [vmem:[%s186 + $0x10] sm:$0xff]
          %193 = vst [vmem:[%s187 + $0x10] sm:$0xff] %v192
          %v194 = vld [vmem:[%s186 + $0x18] sm:$0xff]
          %195 = vst [vmem:[%s187 + $0x18] sm:$0xff] %v194
          %v196 = vld [vmem:[%s186 + $0x20] sm:$0xff]
          %197 = vst [vmem:[%s187 + $0x20] sm:$0xff] %v196
          %v198 = vld [vmem:[%s186 + $0x28] sm:$0xff]
          %199 = vst [vmem:[%s187 + $0x28] sm:$0xff] %v198
          %v200 = vld [vmem:[%s186 + $0x30] sm:$0xff]
          %201 = vst [vmem:[%s187 + $0x30] sm:$0xff] %v200
          %v202 = vld [vmem:[%s186 + $0x38] sm:$0xff]
          %203 = vst [vmem:[%s187 + $0x38] sm:$0xff] %v202
        $region52: #{reverse.0} parent=46 // loop_footer
          %s185 = sadd.s32 1, %s181
        $region53: #{reverse.0} parent=46 // loop_footer_branch
          %180 = sbr.rel target = $region49
        $region54: #{reverse.0} parent=46 // loop_exit
          _
      $region47: #{reverse.0} parent=38 // pred_fallthru
        _
    $region39: #{reverse.0} parent=1 // pred_fallthru
      _
    %232 = vnop

// kernel: frdb_forward.1
$region0: #{frdb_forward.1}
  #allocation0 [shape = 'u32[]', space=smem, size = 0x4, offset = 0x4, fixed_abs, tag = 'smem constant byte address 0x4 - core index']
  #allocation1 [shape = 'u32[144,128]{1,0:T(1,128)}', space=vmem, size = 0x12000, scoped, tag = 'internal scratch']
  %s0 = inlined_call_operand.vmem [shape: f32[2,9,144], index: 0, kind: input, shape index: {}]
  %s1 = inlined_call_operand.vmem [shape: f32[136,9], index: 1, kind: input, shape index: {}]
  %s2 = inlined_call_operand.vmem [shape: f32[72,64], index: 2, kind: input, shape index: {}]
  %s3 = inlined_call_operand.vmem [shape: f32[8,64], index: 3, kind: input, shape index: {}]
  %s4 = inlined_call_operand.vmem [shape: f32[2,4,144], index: 4, kind: output, shape index: {0}]
  %s5 = inlined_call_operand.vmem [shape: f32[2,4,144], index: 5, kind: output, shape index: {1}]
  %6 = xla_tuple %s4, %s5
  %s7 = sld [smem:[#allocation0]]
  $region95: #{frdb_forward.1} parent=0
    _
  %s9 = ssub.s32 1, %s7
  %s10 = scalar_select 0, %s9, %s7
  $region1: #{frdb_forward.1} parent=0
    #allocation2 [shape = 'u8[16384]{0}', space=vmem, size = 0x4000, scoped, tag = 'input window, operand 0']
    loop: start=0, step=1, limit=6
    $region2: #{frdb_forward.1} parent=1 // loop_pre_header
      _
    $region3: #{frdb_forward.1} parent=1 // loop_header
      %s12 = sphi 0, %s16
      %p13 = scmp.ge.s32.totalorder %s12, 6
      %s19 = sphi 0, %s31
      %s20 = sphi 0, %s27
      %s21 = sphi 0, %s19
      %s22 = sphi 0, %s20
      %s23 = sphi 0, %s21
      %s24 = sphi 0, %s22
      %s36 = sphi 0, %s38
      %s39 = sphi 0, %s36
      %s40 = sphi 0, %s39
      %s56 = sphi 0, %s40
      %s60 = sphi 0, %s60
      %s62 = sphi 0, %s60
      %s63 = sphi 0, %s62
      %s77 = sphi 0, %s63
      %s81 = sphi 0, %s81
      %s83 = sphi 0, %s81
      %s84 = sphi 0, %s83
      %s98 = sphi 0, %s84
      %s102 = sphi 0, %s102
      %s104 = sphi 0, %s102
      %s105 = sphi 0, %s104
      %s119 = sphi 0, %s105
      %s127 = sphi 0, %s129
      %s130 = sphi 0, %s127
      %s131 = sphi 0, %s130
      %s147 = sphi 0, %s131
      %s155 = sphi 0, %s157
      %s158 = sphi 0, %s155
      %s159 = sphi 0, %s158
      %s175 = sphi 0, %s159
    $region4: #{frdb_forward.1} parent=1 // loop_header_branch
      %15 = sbr.rel (%p13) target = $region8
    $region5: #{frdb_forward.1} parent=1 // loop_body
      %s17 = ssub.s32 %s12, 1
      %s18 = ssub.s32 %s12, 2
      %s25 = sadd.s32 1, %s20
      %p26 = scmp.ge.s32.totalorder %s25, 2
      %s27 = scalar_select %p26, 0, %s25
      %s28 = sadd.s32 1, %s19
      %s29 = scalar_select %p26, %s28, %s19
      %p30 = scmp.ge.s32.totalorder %s29, 2
      %s31 = scalar_select %p30, 0, %s29
      %s32 = ssub.s32 %s19, %s31
      %s33 = ssub.s32 %s20, %s27
      %s34 = sor.u32 %s32, %s33
      %p35 = scmp.eq.s32.totalorder %s34, 0
      %s37 = sadd.s32 %s36, 1
      %s38 = scalar_select %p35, %s36, %s37
      %p41 = pneg %p35
      %p42 = scmp.eq.s32.totalorder %s12, 3
      %p43 = por %p41, %p42
      %p44 = scmp.ne.s32.totalorder %s36, %s39
      %p45 = scmp.eq.s32.totalorder %s12, 0
      %p46 = por %p44, %p45
      %p47 = scmp.ne.s32.totalorder %s36, %s39
      %p48 = scmp.eq.s32.totalorder %s17, 3
      %p49 = por %p47, %p48
      %p50 = scmp.ne.s32.totalorder %s39, %s40
      %p51 = scmp.eq.s32.totalorder %s17, 0
      %p52 = por %p50, %p51
      %p53 = scmp.ne.s32.totalorder %s39, %s40
      %p54 = scmp.eq.s32.totalorder %s18, 3
      %p55 = por %p53, %p54
      %p57 = scmp.ne.s32.totalorder %s40, %s56
      %p58 = scmp.eq.s32.totalorder %s18, 0
      %p59 = por %p57, %p58
      %s61 = sadd.s32 %s60, 1
      %p64 = scmp.eq.s32.totalorder %s12, 3
      %p65 = scmp.ne.s32.totalorder %s60, %s62
      %p66 = scmp.eq.s32.totalorder %s12, 0
      %p67 = por %p65, %p66
      %p68 = scmp.ne.s32.totalorder %s60, %s62
      %p69 = scmp.eq.s32.totalorder %s17, 3
      %p70 = por %p68, %p69
      %p71 = scmp.ne.s32.totalorder %s62, %s63
      %p72 = scmp.eq.s32.totalorder %s17, 0
      %p73 = por %p71, %p72
      %p74 = scmp.ne.s32.totalorder %s62, %s63
      %p75 = scmp.eq.s32.totalorder %s18, 3
      %p76 = por %p74, %p75
      %p78 = scmp.ne.s32.totalorder %s63, %s77
      %p79 = scmp.eq.s32.totalorder %s18, 0
      %p80 = por %p78, %p79
      %s82 = sadd.s32 %s81, 1
      %p85 = scmp.eq.s32.totalorder %s12, 3
      %p86 = scmp.ne.s32.totalorder %s81, %s83
      %p87 = scmp.eq.s32.totalorder %s12, 0
      %p88 = por %p86, %p87
      %p89 = scmp.ne.s32.totalorder %s81, %s83
      %p90 = scmp.eq.s32.totalorder %s17, 3
      %p91 = por %p89, %p90
      %p92 = scmp.ne.s32.totalorder %s83, %s84
      %p93 = scmp.eq.s32.totalorder %s17, 0
      %p94 = por %p92, %p93
      %p95 = scmp.ne.s32.totalorder %s83, %s84
      %p96 = scmp.eq.s32.totalorder %s18, 3
      %p97 = por %p95, %p96
      %p99 = scmp.ne.s32.totalorder %s84, %s98
      %p100 = scmp.eq.s32.totalorder %s18, 0
      %p101 = por %p99, %p100
      %s103 = sadd.s32 %s102, 1
      %p106 = scmp.eq.s32.totalorder %s12, 3
      %p107 = scmp.ne.s32.totalorder %s102, %s104
      %p108 = scmp.eq.s32.totalorder %s12, 0
      %p109 = por %p107, %p108
      %p110 = scmp.ne.s32.totalorder %s102, %s104
      %p111 = scmp.eq.s32.totalorder %s17, 3
      %p112 = por %p110, %p111
      %p113 = scmp.ne.s32.totalorder %s104, %s105
      %p114 = scmp.eq.s32.totalorder %s17, 0
      %p115 = por %p113, %p114
      %p116 = scmp.ne.s32.totalorder %s104, %s105
      %p117 = scmp.eq.s32.totalorder %s18, 3
      %p118 = por %p116, %p117
      %p120 = scmp.ne.s32.totalorder %s105, %s119
      %p121 = scmp.eq.s32.totalorder %s18, 0
      %p122 = por %p120, %p121
      %s123 = ssub.s32 %s19, %s31
      %s124 = ssub.s32 %s20, %s27
      %s125 = sor.u32 %s123, %s124
      %p126 = scmp.eq.s32.totalorder %s125, 0
      %s128 = sadd.s32 %s127, 1
      %s129 = scalar_select %p126, %s127, %s128
      %p132 = pneg %p126
      %p133 = scmp.eq.s32.totalorder %s12, 3
      %p134 = por %p132, %p133
      %p135 = scmp.ne.s32.totalorder %s127, %s130
      %p136 = scmp.eq.s32.totalorder %s12, 0
      %p137 = por %p135, %p136
      %p138 = scmp.ne.s32.totalorder %s127, %s130
      %p139 = scmp.eq.s32.totalorder %s17, 3
      %p140 = por %p138, %p139
      %p141 = scmp.ne.s32.totalorder %s130, %s131
      %p142 = scmp.eq.s32.totalorder %s17, 0
      %p143 = por %p141, %p142
      %p144 = scmp.ne.s32.totalorder %s130, %s131
      %p145 = scmp.eq.s32.totalorder %s18, 3
      %p146 = por %p144, %p145
      %p148 = scmp.ne.s32.totalorder %s131, %s147
      %p149 = scmp.eq.s32.totalorder %s18, 0
      %p150 = por %p148, %p149
      %s151 = ssub.s32 %s19, %s31
      %s152 = ssub.s32 %s20, %s27
      %s153 = sor.u32 %s151, %s152
      %p154 = scmp.eq.s32.totalorder %s153, 0
      %s156 = sadd.s32 %s155, 1
      %s157 = scalar_select %p154, %s155, %s156
      %p160 = pneg %p154
      %p161 = scmp.eq.s32.totalorder %s12, 3
      %p162 = por %p160, %p161
      %p163 = scmp.ne.s32.totalorder %s155, %s158
      %p164 = scmp.eq.s32.totalorder %s12, 0
      %p165 = por %p163, %p164
      %p166 = scmp.ne.s32.totalorder %s155, %s158
      %p167 = scmp.eq.s32.totalorder %s17, 3
      %p168 = por %p166, %p167
      %p169 = scmp.ne.s32.totalorder %s158, %s159
      %p170 = scmp.eq.s32.totalorder %s17, 0
      %p171 = por %p169, %p170
      %p172 = scmp.ne.s32.totalorder %s158, %s159
      %p173 = scmp.eq.s32.totalorder %s18, 3
      %p174 = por %p172, %p173
      %p176 = scmp.ne.s32.totalorder %s159, %s175
      %p177 = scmp.eq.s32.totalorder %s18, 0
      %p178 = por %p176, %p177
      %p179 = scmp.le.s32.totalorder 1, %s12
      %p180 = scmp.lt.s32.totalorder %s12, 5
      %p181 = pnand %p179, %p180
      %p182 = pneg %p181
      // Predicated region
      $region9: #{frdb_forward.1} parent=5 // pred_check
        _
      $region10: #{frdb_forward.1} parent=5 // pred_check_branch
        %184 = sbr.rel (%p181) target = $region12
      $region11: #{frdb_forward.1} parent=5 // pred_region
        %s185 = ssub.s32 %s12, 1
        // Predicated region
        $region13: #{frdb_forward.1} parent=11 // pred_check
          %p186 = pneg %p73
        $region14: #{frdb_forward.1} parent=11 // pred_check_branch
          %188 = sbr.rel (%p186) target = $region16
        $region15: #{frdb_forward.1} parent=11 // pred_region
          _
        $region16: #{frdb_forward.1} parent=11 // pred_fallthru
          _
        // Predicated region
        $region17: #{frdb_forward.1} parent=11 // pred_check
          %p189 = pneg %p94
        $region18: #{frdb_forward.1} parent=11 // pred_check_branch
          %191 = sbr.rel (%p189) target = $region20
        $region19: #{frdb_forward.1} parent=11 // pred_region
          _
        $region20: #{frdb_forward.1} parent=11 // pred_fallthru
          _
        // Predicated region
        $region21: #{frdb_forward.1} parent=11 // pred_check
          %p192 = pneg %p115
        $region22: #{frdb_forward.1} parent=11 // pred_check_branch
          %194 = sbr.rel (%p192) target = $region24
        $region23: #{frdb_forward.1} parent=11 // pred_region
          _
        $region24: #{frdb_forward.1} parent=11 // pred_fallthru
          _
      $region12: #{frdb_forward.1} parent=5 // pred_fallthru
        _
      %p195 = scmp.lt.s32.totalorder %s12, 4
      // Predicated region
      $region25: #{frdb_forward.1} parent=5 // pred_check
        %p196 = pneg %p195
      $region26: #{frdb_forward.1} parent=5 // pred_check_branch
        %198 = sbr.rel (%p196) target = $region28
      $region27: #{frdb_forward.1} parent=5 // pred_region
        // Predicated region
        $region29: #{frdb_forward.1} parent=27 // pred_check
          %p199 = pneg %p46
        $region30: #{frdb_forward.1} parent=27 // pred_check_branch
          %201 = sbr.rel (%p199) target = $region32
        $region31: #{frdb_forward.1} parent=27 // pred_region
          %s202 = sand.u32 %s36, 1
          %s203 = sand.u32 %s36, 1
          %s204 = smul.addr %s203, 16
          %s205 = scalar_lea.vmem [#allocation2], %s204
          %s206 = smul.addr %s19, 4
          %s207 = sadd.s32 %s20, %s206
          %s208 = smul.addr %s207, 8
          %s209 = scalar_lea.vmem %s0, %s208
          // Predicated region
          $region33: #{frdb_forward.1} parent=31 // pred_check
            _
          $region34: #{frdb_forward.1} parent=31 // pred_check_branch
            %211 = sbr.rel (0) target = $region36
          $region35: #{frdb_forward.1} parent=31 // pred_region
            // Predicated region
            $region37: #{frdb_forward.1} parent=35 // pred_check
              _
            $region38: #{frdb_forward.1} parent=35 // pred_check_branch
              %213 = sbr.rel (0) target = $region40
            $region39: #{frdb_forward.1} parent=35 // pred_region
              // Predicated region
              $region52: #{frdb_forward.1} parent=39 // pred_check
                _
              $region53: #{frdb_forward.1} parent=39 // pred_check_branch
                %230 = sbr.rel (0) target = $region55
              $region54: #{frdb_forward.1} parent=39 // pred_region
                loop: start=0, step=1, limit=1
                $region56: #{frdb_forward.1} parent=54 // loop_pre_header
                  _
                $region57: #{frdb_forward.1} parent=54 // loop_header
                  %s232 = sphi 0, %s236
                  %p233 = scmp.ge.s32.totalorder %s232, 1
                  %s237 = sphi %s209, %s209
                  %s238 = sphi %s205, %s205
                $region58: #{frdb_forward.1} parent=54 // loop_header_branch
                  %235 = sbr.rel (%p233) target = $region62
                $region59: #{frdb_forward.1} parent=54 // loop_body
                  %v239 = vld [vmem:[%s237] sm:$0xff]
                  %240 = vst [vmem:[%s238] sm:$0xff] %v239
                  %v241 = vld [vmem:[%s237 + $0x10] sm:$0xff]
                  %242 = vst [vmem:[%s238 + $0x8] sm:$0xff] %v241
                $region60: #{frdb_forward.1} parent=54 // loop_footer
                  %s236 = sadd.s32 1, %s232
                $region61: #{frdb_forward.1} parent=54 // loop_footer_branch
                  %231 = sbr.rel target = $region57
                $region62: #{frdb_forward.1} parent=54 // loop_exit
                  _
              $region55: #{frdb_forward.1} parent=39 // pred_fallthru
                _
              // Predicated region
              $region63: #{frdb_forward.1} parent=39 // pred_check
                _
              $region64: #{frdb_forward.1} parent=39 // pred_check_branch
                %244 = sbr.rel target = $region66
              $region65: #{frdb_forward.1} parent=39 // pred_region
                _
              $region66: #{frdb_forward.1} parent=39 // pred_fallthru
                _
            $region40: #{frdb_forward.1} parent=35 // pred_fallthru
              _
            // Predicated region
            $region41: #{frdb_forward.1} parent=35 // pred_check
              _
            $region42: #{frdb_forward.1} parent=35 // pred_check_branch
              %215 = sbr.rel target = $region44
            $region43: #{frdb_forward.1} parent=35 // pred_region
              loop: start=0, step=1, limit=1
              $region45: #{frdb_forward.1} parent=43 // loop_pre_header
                _
              $region46: #{frdb_forward.1} parent=43 // loop_header
                %s218 = sphi 0, %s222
                %p219 = scmp.ge.s32.totalorder %s218, 1
                %s223 = sphi %s209, %s209
                %s224 = sphi %s205, %s205
              $region47: #{frdb_forward.1} parent=43 // loop_header_branch
                %221 = sbr.rel (%p219) target = $region51
              $region48: #{frdb_forward.1} parent=43 // loop_body
                %v225 = vld [vmem:[%s223] sm:$0xff]
                %226 = vst [vmem:[%s224] sm:$0xff] %v225
                %v227 = vld [vmem:[%s223 + $0x10] sm:$0xff]
                %228 = vst [vmem:[%s224 + $0x8] sm:$0xff] %v227
              $region49: #{frdb_forward.1} parent=43 // loop_footer
                %s222 = sadd.s32 1, %s218
              $region50: #{frdb_forward.1} parent=43 // loop_footer_branch
                %217 = sbr.rel target = $region46
              $region51: #{frdb_forward.1} parent=43 // loop_exit
                _
            $region44: #{frdb_forward.1} parent=35 // pred_fallthru
              _
          $region36: #{frdb_forward.1} parent=31 // pred_fallthru
            _
          %245 = vnop
        $region32: #{frdb_forward.1} parent=27 // pred_fallthru
          _
      $region28: #{frdb_forward.1} parent=5 // pred_fallthru
        _
      %p246 = scmp.le.s32.totalorder 1, %s12
      %p247 = scmp.lt.s32.totalorder %s12, 5
      %p248 = pnand %p246, %p247
      %p249 = pneg %p248
      // Predicated region
      $region67: #{frdb_forward.1} parent=5 // pred_check
        _
      $region68: #{frdb_forward.1} parent=5 // pred_check_branch
        %251 = sbr.rel (%p248) target = $region70
      $region69: #{frdb_forward.1} parent=5 // pred_region
        %s252 = ssub.s32 %s12, 1
        %s253 = sand.u32 %s39, 1
        %s254 = sand.u32 %s39, 1
        %s255 = smul.addr %s254, 16
        %s256 = scalar_lea.vmem [#allocation2], %s255
        // Predicated region
        $region71: #{frdb_forward.1} parent=69 // pred_check
          %p257 = pneg %p52
        $region72: #{frdb_forward.1} parent=69 // pred_check_branch
          %259 = sbr.rel (%p257) target = $region74
        $region73: #{frdb_forward.1} parent=69 // pred_region
          _
        $region74: #{frdb_forward.1} parent=69 // pred_fallthru
          _
        %s260 = sand.u32 %s39, 1
        %s261 = sand.u32 %s39, 1
        %s262 = smul.addr %s261, 16
        %s263 = scalar_lea.vmem [#allocation2], %s262
        %p264 = pneg %p52
        %p265 = pneg %p49
        %p266 = pneg %p73
        %p267 = pneg %p70
        %p268 = pneg %p94
        %p269 = pneg %p91
        %p270 = pneg %p115
        %p271 = pneg %p112
        %p272 = pneg %p143
        %p273 = pneg %p140
        %p274 = scmp.lt.s32.totalorder %s21, 1
        %s275 = scalar_select %p274, %s21, 1
        %p276 = scmp.lt.s32.totalorder %s22, 1
        %s277 = scalar_select %p276, %s22, 1
        %s278 = smul.addr %s275, 2
        %s279 = sadd.s32 %s277, %s278
        %s280 = smul.addr %s279, 4
        %s281 = scalar_lea.vmem %s4, %s280
        %p282 = pneg %p171
        %p283 = pneg %p168
        %p284 = scmp.lt.s32.totalorder %s21, 1
        %s285 = scalar_select %p284, %s21, 1
        %p286 = scmp.lt.s32.totalorder %s22, 1
        %s287 = scalar_select %p286, %s22, 1
        %s288 = smul.addr %s285, 2
        %s289 = sadd.s32 %s287, %s288
        %s290 = smul.addr %s289, 4
        %s291 = scalar_lea.vmem %s5, %s290
        %p292 = scmp.lt.s32.totalorder %s21, 1
        %s293 = scalar_select %p292, %s21, 1
        %p294 = scmp.lt.s32.totalorder %s22, 1
        %s295 = scalar_select %p294, %s22, 1
        %s296 = smul.addr %s293, 2
        %s297 = sadd.s32 %s295, %s296
        %s298 = smul.addr %s297, 4
        %s299 = scalar_lea.vmem %s4, %s298
        %p300 = scmp.lt.s32.totalorder %s21, 1
        %s301 = scalar_select %p300, %s21, 1
        %p302 = scmp.lt.s32.totalorder %s22, 1
        %s303 = scalar_select %p302, %s22, 1
        %s304 = smul.addr %s301, 2
        %s305 = sadd.s32 %s303, %s304
        %s306 = smul.addr %s305, 4
        %s307 = scalar_lea.vmem %s5, %s306
        %v308 = vld [vmem:[%s256] sm:$0xff]
        %v309 = vld [vmem:[%s256 + $0x8] sm:$0x1]
        %v310 = vld [vmem:[%s1] sm:$0xff]
        %v311 = vld [vmem:[%s1 + $0x8] sm:$0xff]
        %v312 = vld [vmem:[%s1 + $0x10] sm:$0xff]
        %v313 = vld [vmem:[%s1 + $0x18] sm:$0xff]
        %v314 = vld [vmem:[%s1 + $0x20] sm:$0xff]
        %v315 = vld [vmem:[%s1 + $0x28] sm:$0xff]
        %v316 = vld [vmem:[%s1 + $0x30] sm:$0xff]
        %v317 = vld [vmem:[%s1 + $0x38] sm:$0xff]
        %v318 = vld [vmem:[%s1 + $0x40] sm:$0xff]
        %v319 = vld [vmem:[%s1 + $0x48] sm:$0xff]
        %v320 = vld [vmem:[%s1 + $0x50] sm:$0xff]
        %v321 = vld [vmem:[%s1 + $0x58] sm:$0xff]
        %v322 = vld [vmem:[%s1 + $0x60] sm:$0xff]
        %v323 = vld [vmem:[%s1 + $0x68] sm:$0xff]
        %v324 = vld [vmem:[%s1 + $0x70] sm:$0xff]
        %v325 = vld [vmem:[%s1 + $0x78] sm:$0xff]
        %v326 = vld [vmem:[%s1 + $0x80] sm:$0xff]
        %vm327 = vcmask 72704
        %v329 = vsel %vm327, %v310, 0
        %v332 = vsel %vm327, %v311, 0
        %v335 = vsel %vm327, %v312, 0
        %v338 = vsel %vm327, %v313, 0
        %v341 = vsel %vm327, %v314, 0
        %v344 = vsel %vm327, %v315, 0
        %v347 = vsel %vm327, %v316, 0
        %v350 = vsel %vm327, %v317, 0
        %v353 = vsel %vm327, %v318, 0
        %v356 = vsel %vm327, %v319, 0
        %v359 = vsel %vm327, %v320, 0
        %v362 = vsel %vm327, %v321, 0
        %v365 = vsel %vm327, %v322, 0
        %v368 = vsel %vm327, %v323, 0
        %v371 = vsel %vm327, %v324, 0
        %v374 = vsel %vm327, %v325, 0
        %v377 = vsel %vm327, %v326, 0
        %vm379 = vcmask 1040384
        %v381 = vsel %vm379, %v309, 0
        %383 = vmatprep.subr.mxu0 0.0
        %384 = vmatpush1.msra.mxu0 %v308
        %385 = vmatprep.subr.mxu0 0.0
        %386 = vmatpush1.msra.mxu0 %v381
        %387 = vmatprep.subr.mxu0 0.0
        %388 = vmatpush1.msra.mxu0 0.0
        %389 = vmatprep.subr.mxu0 0.0
        %390 = vmatpush1.msra.mxu0 0.0
        %391 = vmatprep.subr.mxu0 0.0
        %392 = vmatpush1.msra.mxu0 0.0
        %393 = vmatprep.subr.mxu0 0.0
        %394 = vmatpush1.msra.mxu0 0.0
        %395 = vmatprep.subr.mxu0 0.0
        %396 = vmatpush1.msra.mxu0 0.0
        %397 = vmatprep.subr.mxu0 0.0
        %398 = vmatpush1.msra.mxu0 0.0
        %399 = vmatprep.subr.mxu0 0.0
        %400 = vmatpush1.msra.mxu0 0.0
        %401 = vmatprep.subr.mxu0 0.0
        %402 = vmatpush1.msra.mxu0 0.0
        %403 = vmatprep.subr.mxu0 0.0
        %404 = vmatpush1.msra.mxu0 0.0
        %405 = vmatprep.subr.mxu0 0.0
        %406 = vmatpush1.msra.mxu0 0.0
        %407 = vmatprep.subr.mxu0 0.0
        %408 = vmatpush1.msra.mxu0 0.0
        %409 = vmatprep.subr.mxu0 0.0
        %410 = vmatpush1.msra.mxu0 0.0
        %411 = vmatprep.subr.mxu0 0.0
        %412 = vmatpush1.msra.mxu0 0.0
        %413 = vmatprep.subr.mxu0 0.0
        %414 = vmatpush1.msra.mxu0 0.0
        %415 = vmatprep.subr.mxu0 0.0
        %416 = vmatpush1.msra.mxu0 0.0
        %417 = vmatprep.subr.mxu0 0.0
        %418 = vmatpush1.msra.mxu0 0.0
        %419 = vmatprep.subr.mxu0 0.0
        %420 = vmatpush1.msra.mxu0 0.0
        %421 = vmatprep.subr.mxu0 0.0
        %422 = vmatpush1.msra.mxu0 0.0
        %423 = vmatprep.subr.mxu0 0.0
        %424 = vmatpush1.msra.mxu0 0.0
        %425 = vmatprep.subr.mxu0 0.0
        %426 = vmatpush1.msra.mxu0 0.0
        %427 = vmatprep.subr.mxu0 0.0
        %428 = vmatpush1.msra.mxu0 0.0
        %429 = vmatprep.subr.mxu0 0.0
        %430 = vmatpush1.msra.mxu0 0.0
        %431 = vmatprep.subr.mxu0 0.0
        %432 = vmatpush1.msra.mxu0 0.0
        %433 = vmatprep.subr.mxu0 0.0
        %434 = vmatpush1.msra.mxu0 0.0
        %435 = vmatprep.subr.mxu0 0.0
        %436 = vmatpush1.msra.mxu0 0.0
        %437 = vmatprep.subr.mxu0 0.0
        %438 = vmatpush1.msra.mxu0 0.0
        %439 = vmatprep.subr.mxu0 0.0
        %440 = vmatpush1.msra.mxu0 0.0
        %441 = vmatprep.subr.mxu0 0.0
        %442 = vmatpush1.msra.mxu0 0.0
        %443 = vmatprep.subr.mxu0 0.0
        %444 = vmatpush1.msra.mxu0 0.0
        %445 = vmatprep.subr.mxu0 0.0
        %446 = vmatpush1.msra.mxu0 0.0
        %447 = vmatprep.mubr.f32.mxu0 0.0
        %448 = vmatmul.mubr.f32.gmra.mrb[0].mxu0 %v329
        %v449 = vpop.f32.mrb[0].mxu0
        %v450 = vadd.f32 0.0, %v449
        %v451 = vpop.f32.mrb[0].mxu0
        %452 = vmatprep.mubr.f32.mxu0 0.0
        %453 = vmatmul.mubr.f32.gmra.mrb[0].mxu0 %v332
        %v454 = vpop.f32.mrb[0].mxu0
        %v455 = vadd.f32 0.0, %v454
        %v456 = vpop.f32.mrb[0].mxu0
        %457 = vmatprep.mubr.f32.mxu0 0.0
        %458 = vmatmul.mubr.f32.gmra.mrb[0].mxu0 %v335
        %v459 = vpop.f32.mrb[0].mxu0
        %v460 = vadd.f32 0.0, %v459
        %v461 = vpop.f32.mrb[0].mxu0
        %462 = vmatprep.mubr.f32.mxu0 0.0
        %463 = vmatmul.mubr.f32.gmra.mrb[0].mxu0 %v338
        %v464 = vpop.f32.mrb[0].mxu0
        %v465 = vadd.f32 0.0, %v464
        %v466 = vpop.f32.mrb[0].mxu0
        %467 = vmatprep.mubr.f32.mxu0 0.0
        %468 = vmatmul.mubr.f32.gmra.mrb[0].mxu0 %v341
        %v469 = vpop.f32.mrb[0].mxu0
        %v470 = vadd.f32 0.0, %v469
        %v471 = vpop.f32.mrb[0].mxu0
        %472 = vmatprep.mubr.f32.mxu0 0.0
        %473 = vmatmul.mubr.f32.gmra.mrb[0].mxu0 %v344
        %v474 = vpop.f32.mrb[0].mxu0
        %v475 = vadd.f32 0.0, %v474
        %v476 = vpop.f32.mrb[0].mxu0
        %477 = vmatprep.mubr.f32.mxu0 0.0
        %478 = vmatmul.mubr.f32.gmra.mrb[0].mxu0 %v347
        %v479 = vpop.f32.mrb[0].mxu0
        %v480 = vadd.f32 0.0, %v479
        %v481 = vpop.f32.mrb[0].mxu0
        %482 = vmatprep.mubr.f32.mxu0 0.0
        %483 = vmatmul.mubr.f32.gmra.mrb[0].mxu0 %v350
        %v484 = vpop.f32.mrb[0].mxu0
        %v485 = vadd.f32 0.0, %v484
        %v486 = vpop.f32.mrb[0].mxu0
        %487 = vmatprep.mubr.f32.mxu0 0.0
        %488 = vmatmul.mubr.f32.gmra.mrb[0].mxu0 %v353
        %v489 = vpop.f32.mrb[0].mxu0
        %v490 = vadd.f32 0.0, %v489
        %v491 = vpop.f32.mrb[0].mxu0
        %492 = vmatprep.mubr.f32.mxu0 0.0
        %493 = vmatmul.mubr.f32.gmra.mrb[0].mxu0 %v356
        %v494 = vpop.f32.mrb[0].mxu0
        %v495 = vadd.f32 0.0, %v494
        %v496 = vpop.f32.mrb[0].mxu0
        %497 = vmatprep.mubr.f32.mxu0 0.0
        %498 = vmatmul.mubr.f32.gmra.mrb[0].mxu0 %v359
        %v499 = vpop.f32.mrb[0].mxu0
        %v500 = vadd.f32 0.0, %v499
        %v501 = vpop.f32.mrb[0].mxu0
        %502 = vmatprep.mubr.f32.mxu0 0.0
        %503 = vmatmul.mubr.f32.gmra.mrb[0].mxu0 %v362
        %v504 = vpop.f32.mrb[0].mxu0
        %v505 = vadd.f32 0.0, %v504
        %v506 = vpop.f32.mrb[0].mxu0
        %507 = vmatprep.mubr.f32.mxu0 0.0
        %508 = vmatmul.mubr.f32.gmra.mrb[0].mxu0 %v365
        %v509 = vpop.f32.mrb[0].mxu0
        %v510 = vadd.f32 0.0, %v509
        %v511 = vpop.f32.mrb[0].mxu0
        %512 = vmatprep.mubr.f32.mxu0 0.0
        %513 = vmatmul.mubr.f32.gmra.mrb[0].mxu0 %v368
        %v514 = vpop.f32.mrb[0].mxu0
        %v515 = vadd.f32 0.0, %v514
        %v516 = vpop.f32.mrb[0].mxu0
        %517 = vmatprep.mubr.f32.mxu0 0.0
        %518 = vmatmul.mubr.f32.gmra.mrb[0].mxu0 %v371
        %v519 = vpop.f32.mrb[0].mxu0
        %v520 = vadd.f32 0.0, %v519
        %v521 = vpop.f32.mrb[0].mxu0
        %522 = vmatprep.mubr.f32.mxu0 0.0
        %523 = vmatmul.mubr.f32.gmra.mrb[0].mxu0 %v374
        %v524 = vpop.f32.mrb[0].mxu0
        %v525 = vadd.f32 0.0, %v524
        %v526 = vpop.f32.mrb[0].mxu0
        %527 = vmatprep.mubr.f32.mxu0 0.0
        %528 = vmatmul.mubr.f32.gmra.mrb[0].mxu0 %v377
        %v529 = vpop.f32.mrb[0].mxu0
        %v530 = vadd.f32 0.0, %v529
        %v531 = vpop.f32.mrb[0].mxu0
        %532 = vdwg.mxu0
        %vm533 = vcmp.gt.f32.partialorder %v450, 0.0
        %vm534 = vcmp.gt.f32.partialorder %v455, 0.0
        %vm535 = vcmp.gt.f32.partialorder %v460, 0.0
        %vm536 = vcmp.gt.f32.partialorder %v465, 0.0
        %vm537 = vcmp.gt.f32.partialorder %v470, 0.0
        %vm538 = vcmp.gt.f32.partialorder %v475, 0.0
        %vm539 = vcmp.gt.f32.partialorder %v480, 0.0
        %vm540 = vcmp.gt.f32.partialorder %v485, 0.0
        %v541 = vmul.f32 %v450, 0.1
        %v542 = vmul.f32 %v455, 0.1
        %v543 = vmul.f32 %v460, 0.1
        %v544 = vmul.f32 %v465, 0.1
        %v545 = vmul.f32 %v470, 0.1
        %v546 = vmul.f32 %v475, 0.1
        %v547 = vmul.f32 %v480, 0.1
        %v548 = vmul.f32 %v485, 0.1
        %v549 = vsel %vm533, %v450, %v541
        %v550 = vsel %vm534, %v455, %v542
        %v551 = vsel %vm535, %v460, %v543
        %v552 = vsel %vm536, %v465, %v544
        %v553 = vsel %vm537, %v470, %v545
        %v554 = vsel %vm538, %v475, %v546
        %v555 = vsel %vm539, %v480, %v547
        %v556 = vsel %vm540, %v485, %v548
        %v557 = vld [vmem:[%s2] sm:$0xff]
        %v558 = vld [vmem:[%s2 + $0x8] sm:$0xff]
        %v559 = vld [vmem:[%s2 + $0x10] sm:$0xff]
        %v560 = vld [vmem:[%s2 + $0x18] sm:$0xff]
        %v561 = vld [vmem:[%s2 + $0x20] sm:$0xff]
        %v562 = vld [vmem:[%s2 + $0x28] sm:$0xff]
        %v563 = vld [vmem:[%s2 + $0x30] sm:$0xff]
        %v564 = vld [vmem:[%s2 + $0x38] sm:$0xff]
        %v565 = vld [vmem:[%s2 + $0x40] sm:$0xff]
        %vm566 = vcmask 523264
        %v568 = vsel %vm566, %v557, 0
        %v571 = vsel %vm566, %v558, 0
        %v574 = vsel %vm566, %v559, 0
        %v577 = vsel %vm566, %v560, 0
        %v580 = vsel %vm566, %v561, 0
        %v583 = vsel %vm566, %v562, 0
        %v586 = vsel %vm566, %v563, 0
        %v589 = vsel %vm566, %v564, 0
        %v592 = vsel %vm566, %v565, 0
        %594 = vmatprep.subr.mxu0 0.0
        %595 = vmatpush1.msra.mxu0 %v549
        %596 = vmatprep.subr.mxu0 0.0
        %597 = vmatpush1.msra.mxu0 %v550
        %598 = vmatprep.subr.mxu0 0.0
        %599 = vmatpush1.msra.mxu0 %v551
        %600 = vmatprep.subr.mxu0 0.0
        %601 = vmatpush1.msra.mxu0 %v552
        %602 = vmatprep.subr.mxu0 0.0
        %603 = vmatpush1.msra.mxu0 %v553
        %604 = vmatprep.subr.mxu0 0.0
        %605 = vmatpush1.msra.mxu0 %v554
        %606 = vmatprep.subr.mxu0 0.0
        %607 = vmatpush1.msra.mxu0 %v555
        %608 = vmatprep.subr.mxu0 0.0
        %609 = vmatpush1.msra.mxu0 %v556
        %610 = vmatprep.subr.mxu0 0.0
        %611 = vmatpush1.msra.mxu0 0.0
        %612 = vmatprep.subr.mxu0 0.0
        %613 = vmatpush1.msra.mxu0 0.0
        %614 = vmatprep.subr.mxu0 0.0
        %615 = vmatpush1.msra.mxu0 0.0
        %616 = vmatprep.subr.mxu0 0.0
        %617 = vmatpush1.msra.mxu0 0.0
        %618 = vmatprep.subr.mxu0 0.0
        %619 = vmatpush1.msra.mxu0 0.0
        %620 = vmatprep.subr.mxu0 0.0
        %621 = vmatpush1.msra.mxu0 0.0
        %622 = vmatprep.subr.mxu0 0.0
        %623 = vmatpush1.msra.mxu0 0.0
        %624 = vmatprep.subr.mxu0 0.0
        %625 = vmatpush1.msra.mxu0 0.0
        %626 = vmatprep.subr.mxu0 0.0
        %627 = vmatpush1.msra.mxu0 0.0
        %628 = vmatprep.subr.mxu0 0.0
        %629 = vmatpush1.msra.mxu0 0.0
        %630 = vmatprep.subr.mxu0 0.0
        %631 = vmatpush1.msra.mxu0 0.0
        %632 = vmatprep.subr.mxu0 0.0
        %633 = vmatpush1.msra.mxu0 0.0
        %634 = vmatprep.subr.mxu0 0.0
        %635 = vmatpush1.msra.mxu0 0.0
        %636 = vmatprep.subr.mxu0 0.0
        %637 = vmatpush1.msra.mxu0 0.0
        %638 = vmatprep.subr.mxu0 0.0
        %639 = vmatpush1.msra.mxu0 0.0
        %640 = vmatprep.subr.mxu0 0.0
        %641 = vmatpush1.msra.mxu0 0.0
        %642 = vmatprep.subr.mxu0 0.0
        %643 = vmatpush1.msra.mxu0 0.0
        %644 = vmatprep.subr.mxu0 0.0
        %645 = vmatpush1.msra.mxu0 0.0
        %646 = vmatprep.subr.mxu0 0.0
        %647 = vmatpush1.msra.mxu0 0.0
        %648 = vmatprep.subr.mxu0 0.0
        %649 = vmatpush1.msra.mxu0 0.0
        %650 = vmatprep.subr.mxu0 0.0
        %651 = vmatpush1.msra.mxu0 0.0
        %652 = vmatprep.subr.mxu0 0.0
        %653 = vmatpush1.msra.mxu0 0.0
        %654 = vmatprep.subr.mxu0 0.0
        %655 = vmatpush1.msra.mxu0 0.0
        %656 = vmatprep.subr.mxu0 0.0
        %657 = vmatpush1.msra.mxu0 0.0
        %658 = vmatprep.mubr.f32.mxu0 0.0
        %659 = vmatmul.mubr.f32.gmra.mrb[0].mxu0 %v568
        %v660 = vpop.f32.mrb[0].mxu0
        %v661 = vadd.f32 0.0, %v660
        %v662 = vpop.f32.mrb[0].mxu0
        %663 = vmatprep.mubr.f32.mxu0 0.0
        %664 = vmatmul.mubr.f32.gmra.mrb[0].mxu0 %v571
        %v665 = vpop.f32.mrb[0].mxu0
        %v666 = vadd.f32 0.0, %v665
        %v667 = vpop.f32.mrb[0].mxu0
        %668 = vmatprep.mubr.f32.mxu0 0.0
        %669 = vmatmul.mubr.f32.gmra.mrb[0].mxu0 %v574
        %v670 = vpop.f32.mrb[0].mxu0
        %v671 = vadd.f32 0.0, %v670
        %v672 = vpop.f32.mrb[0].mxu0
        %673 = vmatprep.mubr.f32.mxu0 0.0
        %674 = vmatmul.mubr.f32.gmra.mrb[0].mxu0 %v577
        %v675 = vpop.f32.mrb[0].mxu0
        %v676 = vadd.f32 0.0, %v675
        %v677 = vpop.f32.mrb[0].mxu0
        %678 = vmatprep.mubr.f32.mxu0 0.0
        %679 = vmatmul.mubr.f32.gmra.mrb[0].mxu0 %v580
        %v680 = vpop.f32.mrb[0].mxu0
        %v681 = vadd.f32 0.0, %v680
        %v682 = vpop.f32.mrb[0].mxu0
        %683 = vmatprep.mubr.f32.mxu0 0.0
        %684 = vmatmul.mubr.f32.gmra.mrb[0].mxu0 %v583
        %v685 = vpop.f32.mrb[0].mxu0
        %v686 = vadd.f32 0.0, %v685
        %v687 = vpop.f32.mrb[0].mxu0
        %688 = vmatprep.mubr.f32.mxu0 0.0
        %689 = vmatmul.mubr.f32.gmra.mrb[0].mxu0 %v586
        %v690 = vpop.f32.mrb[0].mxu0
        %v691 = vadd.f32 0.0, %v690
        %v692 = vpop.f32.mrb[0].mxu0
        %693 = vmatprep.mubr.f32.mxu0 0.0
        %694 = vmatmul.mubr.f32.gmra.mrb[0].mxu0 %v589
        %v695 = vpop.f32.mrb[0].mxu0
        %v696 = vadd.f32 0.0, %v695
        %v697 = vpop.f32.mrb[0].mxu0
        %698 = vmatprep.mubr.f32.mxu0 0.0
        %699 = vmatmul.mubr.f32.gmra.mrb[0].mxu0 %v592
        %v700 = vpop.f32.mrb[0].mxu0
        %v701 = vadd.f32 0.0, %v700
        %v702 = vpop.f32.mrb[0].mxu0
        %703 = vdwg.mxu0
        %v704 = vadd.f32 %v490, %v661
        %v705 = vadd.f32 %v495, %v666
        %v706 = vadd.f32 %v500, %v671
        %v707 = vadd.f32 %v505, %v676
        %v708 = vadd.f32 %v510, %v681
        %v709 = vadd.f32 %v515, %v686
        %v710 = vadd.f32 %v520, %v691
        %v711 = vadd.f32 %v525, %v696
        %vm712 = vcmp.gt.f32.partialorder %v704, 0.0
        %vm713 = vcmp.gt.f32.partialorder %v705, 0.0
        %vm714 = vcmp.gt.f32.partialorder %v706, 0.0
        %vm715 = vcmp.gt.f32.partialorder %v707, 0.0
        %vm716 = vcmp.gt.f32.partialorder %v708, 0.0
        %vm717 = vcmp.gt.f32.partialorder %v709, 0.0
        %vm718 = vcmp.gt.f32.partialorder %v710, 0.0
        %vm719 = vcmp.gt.f32.partialorder %v711, 0.0
        %v720 = vmul.f32 %v704, 0.1
        %v721 = vmul.f32 %v705, 0.1
        %v722 = vmul.f32 %v706, 0.1
        %v723 = vmul.f32 %v707, 0.1
        %v724 = vmul.f32 %v708, 0.1
        %v725 = vmul.f32 %v709, 0.1
        %v726 = vmul.f32 %v710, 0.1
        %v727 = vmul.f32 %v711, 0.1
        %v728 = vsel %vm712, %v704, %v720
        %v729 = vsel %vm713, %v705, %v721
        %v730 = vsel %vm714, %v706, %v722
        %v731 = vsel %vm715, %v707, %v723
        %v732 = vsel %vm716, %v708, %v724
        %v733 = vsel %vm717, %v709, %v725
        %v734 = vsel %vm718, %v710, %v726
        %v735 = vsel %vm719, %v711, %v727
        %v736 = vadd.f32 %v530, %v701
        %v737 = vld [vmem:[%s3] sm:$0xff]
        %v739 = vsel %vm566, %v737, 0
        %741 = vmatprep.subr.mxu0 0.0
        %742 = vmatpush1.msra.mxu0 %v728
        %743 = vmatprep.subr.mxu0 0.0
        %744 = vmatpush1.msra.mxu0 %v729
        %745 = vmatprep.subr.mxu0 0.0
        %746 = vmatpush1.msra.mxu0 %v730
        %747 = vmatprep.subr.mxu0 0.0
        %748 = vmatpush1.msra.mxu0 %v731
        %749 = vmatprep.subr.mxu0 0.0
        %750 = vmatpush1.msra.mxu0 %v732
        %751 = vmatprep.subr.mxu0 0.0
        %752 = vmatpush1.msra.mxu0 %v733
        %753 = vmatprep.subr.mxu0 0.0
        %754 = vmatpush1.msra.mxu0 %v734
        %755 = vmatprep.subr.mxu0 0.0
        %756 = vmatpush1.msra.mxu0 %v735
        %757 = vmatprep.subr.mxu0 0.0
        %758 = vmatpush1.msra.mxu0 0.0
        %759 = vmatprep.subr.mxu0 0.0
        %760 = vmatpush1.msra.mxu0 0.0
        %761 = vmatprep.subr.mxu0 0.0
        %762 = vmatpush1.msra.mxu0 0.0
        %763 = vmatprep.subr.mxu0 0.0
        %764 = vmatpush1.msra.mxu0 0.0
        %765 = vmatprep.subr.mxu0 0.0
        %766 = vmatpush1.msra.mxu0 0.0
        %767 = vmatprep.subr.mxu0 0.0
        %768 = vmatpush1.msra.mxu0 0.0
        %769 = vmatprep.subr.mxu0 0.0
        %770 = vmatpush1.msra.mxu0 0.0
        %771 = vmatprep.subr.mxu0 0.0
        %772 = vmatpush1.msra.mxu0 0.0
        %773 = vmatprep.subr.mxu0 0.0
        %774 = vmatpush1.msra.mxu0 0.0
        %775 = vmatprep.subr.mxu0 0.0
        %776 = vmatpush1.msra.mxu0 0.0
        %777 = vmatprep.subr.mxu0 0.0
        %778 = vmatpush1.msra.mxu0 0.0
        %779 = vmatprep.subr.mxu0 0.0
        %780 = vmatpush1.msra.mxu0 0.0
        %781 = vmatprep.subr.mxu0 0.0
        %782 = vmatpush1.msra.mxu0 0.0
        %783 = vmatprep.subr.mxu0 0.0
        %784 = vmatpush1.msra.mxu0 0.0
        %785 = vmatprep.subr.mxu0 0.0
        %786 = vmatpush1.msra.mxu0 0.0
        %787 = vmatprep.subr.mxu0 0.0
        %788 = vmatpush1.msra.mxu0 0.0
        %789 = vmatprep.subr.mxu0 0.0
        %790 = vmatpush1.msra.mxu0 0.0
        %791 = vmatprep.subr.mxu0 0.0
        %792 = vmatpush1.msra.mxu0 0.0
        %793 = vmatprep.subr.mxu0 0.0
        %794 = vmatpush1.msra.mxu0 0.0
        %795 = vmatprep.subr.mxu0 0.0
        %796 = vmatpush1.msra.mxu0 0.0
        %797 = vmatprep.subr.mxu0 0.0
        %798 = vmatpush1.msra.mxu0 0.0
        %799 = vmatprep.subr.mxu0 0.0
        %800 = vmatpush1.msra.mxu0 0.0
        %801 = vmatprep.subr.mxu0 0.0
        %802 = vmatpush1.msra.mxu0 0.0
        %803 = vmatprep.subr.mxu0 0.0
        %804 = vmatpush1.msra.mxu0 0.0
        %805 = vmatprep.mubr.f32.mxu0 0.0
        %806 = vmatmul.mubr.f32.gmra.mrb[0].mxu0 %v739
        %v807 = vpop.f32.mrb[0].mxu0
        %v808 = vadd.f32 0.0, %v807
        %v809 = vpop.f32.mrb[0].mxu0
        %810 = vdwg.mxu0
        %v811 = vadd.f32 %v736, %v808
        %v812 = vand.u32 2147483647, %v811
        %vm813 = vcmp.le.f32.partialorder %v812, 0.7853982
        %vm814 = vcmp.lt.s32.totalorder %v811, 0
        %v815 = vand.u32 %v811, 2139095040
        %v816 = vshrl.u32 %v815, 23
        %v817 = vsub.s32 %v816, 127
        %v818 = vand.u32 2147483647, %v811
        %v819 = vand.u32 %v818, 8388607
        %v820 = vor.u32 %v819, 8388608
        %v821 = vsub.s32 0, %v820
        %v822 = vadd.s32 %v817, 1
        %vm823 = vcmp.gt.s32.totalorder %v822, 0
        %v824 = vsel %vm823, %v822, 0
        %v825 = vshrl.u32 %v824, 5
        %v826 = vand.u32 %v824, 31
        %v827 = vsub.s32 32, %v826
        %v828 = vshrl.u32 683565275, %v827
        %v829 = vshll.u32 683565275, %v826
        %v830 = vshrl.u32 2475754826, %v827
        %v831 = vor.u32 %v829, %v830
        %v832 = vshll.u32 2475754826, %v826
        %v833 = vshrl.u32 2131351028, %v827
        %v834 = vor.u32 %v832, %v833
        %v835 = vshll.u32 2131351028, %v826
        %v836 = vshrl.u32 2102212464, %v827
        %v837 = vor.u32 %v835, %v836
        %v838 = vshll.u32 2102212464, %v826
        %v839 = vshrl.u32 920167782, %v827
        %v840 = vor.u32 %v838, %v839
        %v841 = vshll.u32 920167782, %v826
        %v842 = vshrl.u32 1326507024, %v827
        %v843 = vor.u32 %v841, %v842
        %vm844 = vcmp.lt.s32.totalorder %v825, 1
        %vm845 = vcmp.lt.s32.totalorder %v825, 2
        %vm846 = vcmp.lt.s32.totalorder %v825, 3
        %vm847 = vcmp.lt.s32.totalorder %v825, 4
        %v848 = vsel %vm844, %v828, %v831
        %v849 = vsel %vm847, %v837, 2102212464
        %v850 = vsel %vm846, %v834, %v849
        %v851 = vsel %vm845, %v848, %v850
        %v852 = vsel %vm844, %v831, %v834
        %v853 = vsel %vm847, %v840, 920167782
        %v854 = vsel %vm846, %v837, %v853
        %v855 = vsel %vm845, %v852, %v854
        %v856 = vsel %vm844, %v834, %v837
        %v857 = vsel %vm847, %v843, 1326507024
        %v858 = vsel %vm846, %v840, %v857
        %v859 = vsel %vm845, %v856, %v858
        %v860 = vshll.u32 %v820, 8
        %v861 = vmul.u32.u64.compose %v860, %v859
        %v862 = vextract.low.u32 %v861
        %v863 = vextract.high.u32 %v861
        %v864 = vmul.u32.u64.compose %v860, %v855
        %v865 = vextract.low.u32 %v864
        %v866 = vextract.high.u32 %v864
        %v867 = vmul.u32 %v860, %v851
        %v868 = vadd.s32 %v863, %v865
        %vm869 = vc.u32 %v863, %v865
        %v870 = vadd.s32 %v866, 1
        %v871 = vsel %vm869, %v870, %v866
        %v872 = vadd.s32 %v867, %v871
        %v873 = vadd.s32 %v872, 536870912
        %v874 = vshrl.u32 %v873, 30
        %v875 = vshll.u32 %v874, 30
        %v876 = vsub.s32 %v872, %v875
        %vm877 = vcmp.lt.s32.totalorder %v876, 0
        %v878 = vsub.s32 0, %v876
        %v879 = vsel %vm877, %v878, %v876
        %v880 = vclz %v879
        %v881 = vsub.s32 %v880, 2
        %vm882 = vcmp.gt.s32.totalorder 0, %v881
        %v883 = vsel %vm882, 0, %v881
        %v884 = vsub.s32 32, %v883
        %v885 = vshll.u32 %v876, %v883
        %v886 = vshrl.u32 %v868, %v884
        %v887 = vor.u32 %v885, %v886
        %v888 = vsub.s32 4294967266, %v883
        %v889 = vadd.s32 %v888, 127
        %v890 = vshll.u32 %v889, 23
        %v891 = vor.u32 4788187, %v890
        %v892 = vand.u32 2147483647, %v891
        %v894 = vcvt.s32.f32 %v887
        %v895 = vmul.f32 %v894, %v892
        %v896 = vxor.u32 %v895, 2147483648
        %v897 = vsel %vm814, %v896, %v895
        %v898 = vsub.s32 4, %v874
        %v899 = vsel %vm814, %v898, %v874
        %v900 = vsel %vm813, %v811, %v897
        %v901 = vsel %vm813, 0, %v899
        %v902 = vcosq.f32.pop %v900
        %v903 = vsinq.f32.pop %v900
        %vm904 = vweird.f32 %v811
        %v905 = vand.u32 %v901, 3
        %vm906 = vcmp.lt.s32.totalorder %v905, 2
        %vm907 = vcmp.eq.s32.totalorder %v905, 0
        %v908 = vxor.u32 %v903, 2147483648
        %v909 = vsel %vm907, %v902, %v908
        %vm910 = vcmp.eq.s32.totalorder %v905, 2
        %v911 = vxor.u32 %v902, 2147483648
        %v912 = vsel %vm910, %v911, %v903
        %v913 = vsel %vm906, %v909, %v912
        %v914 = vsel %vm904, nan, %v913
        %v916 = vrot.slane %v914, 4
        %v918 = vmul.f32 %v811, %v916
        %919 = vst [vmem:[%s299] sm:$0xf] %v918
        %v920 = vand.u32 2147483647, %v811
        %vm921 = vcmp.le.f32.partialorder %v920, 0.7853982
        %vm922 = vcmp.lt.s32.totalorder %v811, 0
        %v923 = vand.u32 %v811, 2139095040
        %v924 = vshrl.u32 %v923, 23
        %v925 = vsub.s32 %v924, 127
        %v926 = vand.u32 2147483647, %v811
        %v927 = vand.u32 %v926, 8388607
        %v928 = vor.u32 %v927, 8388608
        %v929 = vsub.s32 0, %v928
        %v930 = vadd.s32 %v925, 1
        %vm931 = vcmp.gt.s32.totalorder %v930, 0
        %v932 = vsel %vm931, %v930, 0
        %v933 = vshrl.u32 %v932, 5
        %v934 = vand.u32 %v932, 31
        %v935 = vsub.s32 32, %v934
        %v936 = vshrl.u32 683565275, %v935
        %v937 = vshll.u32 683565275, %v934
        %v938 = vshrl.u32 2475754826, %v935
        %v939 = vor.u32 %v937, %v938
        %v940 = vshll.u32 2475754826, %v934
        %v941 = vshrl.u32 2131351028, %v935
        %v942 = vor.u32 %v940, %v941
        %v943 = vshll.u32 2131351028, %v934
        %v944 = vshrl.u32 2102212464, %v935
        %v945 = vor.u32 %v943, %v944
        %v946 = vshll.u32 2102212464, %v934
        %v947 = vshrl.u32 920167782, %v935
        %v948 = vor.u32 %v946, %v947
        %v949 = vshll.u32 920167782, %v934
        %v950 = vshrl.u32 1326507024, %v935
        %v951 = vor.u32 %v949, %v950
        %vm952 = vcmp.lt.s32.totalorder %v933, 1
        %vm953 = vcmp.lt.s32.totalorder %v933, 2
        %vm954 = vcmp.lt.s32.totalorder %v933, 3
        %vm955 = vcmp.lt.s32.totalorder %v933, 4
        %v956 = vsel %vm952, %v936, %v939
        %v957 = vsel %vm955, %v945, 2102212464
        %v958 = vsel %vm954, %v942, %v957
        %v959 = vsel %vm953, %v956, %v958
        %v960 = vsel %vm952, %v939, %v942
        %v961 = vsel %vm955, %v948, 920167782
        %v962 = vsel %vm954, %v945, %v961
        %v963 = vsel %vm953, %v960, %v962
        %v964 = vsel %vm952, %v942, %v945
        %v965 = vsel %vm955, %v951, 1326507024
        %v966 = vsel %vm954, %v948, %v965
        %v967 = vsel %vm953, %v964, %v966
        %v968 = vshll.u32 %v928, 8
        %v969 = vmul.u32.u64.compose %v968, %v967
        %v970 = vextract.low.u32 %v969
        %v971 = vextract.high.u32 %v969
        %v972 = vmul.u32.u64.compose %v968, %v963
        %v973 = vextract.low.u32 %v972
        %v974 = vextract.high.u32 %v972
        %v975 = vmul.u32 %v968, %v959
        %v976 = vadd.s32 %v971, %v973
        %vm977 = vc.u32 %v971, %v973
        %v978 = vadd.s32 %v974, 1
        %v979 = vsel %vm977, %v978, %v974
        %v980 = vadd.s32 %v975, %v979
        %v981 = vadd.s32 %v980, 536870912
        %v982 = vshrl.u32 %v981, 30
        %v983 = vshll.u32 %v982, 30
        %v984 = vsub.s32 %v980, %v983
        %vm985 = vcmp.lt.s32.totalorder %v984, 0
        %v986 = vsub.s32 0, %v984
        %v987 = vsel %vm985, %v986, %v984
        %v988 = vclz %v987
        %v989 = vsub.s32 %v988, 2
        %vm990 = vcmp.gt.s32.totalorder 0, %v989
        %v991 = vsel %vm990, 0, %v989
        %v992 = vsub.s32 32, %v991
        %v993 = vshll.u32 %v984, %v991
        %v994 = vshrl.u32 %v976, %v992
        %v995 = vor.u32 %v993, %v994
        %v996 = vsub.s32 4294967266, %v991
        %v997 = vadd.s32 %v996, 127
        %v998 = vshll.u32 %v997, 23
        %v999 = vor.u32 4788187, %v998
        %v1000 = vand.u32 2147483647, %v999
        %v1002 = vcvt.s32.f32 %v995
        %v1003 = vmul.f32 %v1002, %v1000
        %v1004 = vxor.u32 %v1003, 2147483648
        %v1005 = vsel %vm922, %v1004, %v1003
        %v1006 = vsub.s32 4, %v982
        %v1007 = vsel %vm922, %v1006, %v982
        %v1008 = vsel %vm921, %v811, %v1005
        %v1009 = vsel %vm921, 0, %v1007
        %v1010 = vcosq.f32.pop %v1008
        %v1011 = vsinq.f32.pop %v1008
        %vm1012 = vweird.f32 %v811
        %v1013 = vadd.s32 %v1009, 3
        %v1014 = vand.u32 %v1013, 3
        %vm1015 = vcmp.lt.s32.totalorder %v1014, 2
        %vm1016 = vcmp.eq.s32.totalorder %v1014, 0
        %v1017 = vxor.u32 %v1011, 2147483648
        %v1018 = vsel %vm1016, %v1010, %v1017
        %vm1019 = vcmp.eq.s32.totalorder %v1014, 2
        %v1020 = vxor.u32 %v1010, 2147483648
        %v1021 = vsel %vm1019, %v1020, %v1011
        %v1022 = vsel %vm1015, %v1018, %v1021
        %v1023 = vsel %vm1012, nan, %v1022
        %v1025 = vrot.slane %v1023, 4
        %v1027 = vmul.f32 %v811, %v1025
        %1028 = vst [vmem:[%s307] sm:$0xf] %v1027
        %p1029 = scmp.lt.s32.totalorder %s21, 1
        %s1030 = scalar_select %p1029, %s21, 1
        %p1031 = scmp.lt.s32.totalorder %s22, 1
        %s1032 = scalar_select %p1031, %s22, 1
        %s1033 = smul.addr %s1030, 2
        %s1034 = sadd.s32 %s1032, %s1033
        %s1035 = smul.addr %s1034, 4
        %s1036 = scalar_lea.vmem %s4, %s1035
        %p1037 = scmp.lt.s32.totalorder %s21, 1
        %s1038 = scalar_select %p1037, %s21, 1
        %p1039 = scmp.lt.s32.totalorder %s22, 1
        %s1040 = scalar_select %p1039, %s22, 1
        %s1041 = smul.addr %s1038, 2
        %s1042 = sadd.s32 %s1040, %s1041
        %s1043 = smul.addr %s1042, 4
        %s1044 = scalar_lea.vmem %s5, %s1043
        // Predicated region
        $region75: #{frdb_forward.1} parent=69 // pred_check
          %p1045 = pneg %p140
        $region76: #{frdb_forward.1} parent=69 // pred_check_branch
          %1047 = sbr.rel (%p1045) target = $region78
        $region77: #{frdb_forward.1} parent=69 // pred_region
          _
        $region78: #{frdb_forward.1} parent=69 // pred_fallthru
          _
        // Predicated region
        $region79: #{frdb_forward.1} parent=69 // pred_check
          %p1048 = pneg %p168
        $region80: #{frdb_forward.1} parent=69 // pred_check_branch
          %1050 = sbr.rel (%p1048) target = $region82
        $region81: #{frdb_forward.1} parent=69 // pred_region
          _
        $region82: #{frdb_forward.1} parent=69 // pred_fallthru
          _
      $region70: #{frdb_forward.1} parent=5 // pred_fallthru
        _
      %p1051 = scmp.le.s32.totalorder 2, %s12
      // Predicated region
      $region83: #{frdb_forward.1} parent=5 // pred_check
        %p1052 = pneg %p1051
      $region84: #{frdb_forward.1} parent=5 // pred_check_branch
        %1054 = sbr.rel (%p1052) target = $region86
      $region85: #{frdb_forward.1} parent=5 // pred_region
        %s1055 = ssub.s32 %s12, 2
        // Predicated region
        $region87: #{frdb_forward.1} parent=85 // pred_check
          %p1056 = pneg %p146
        $region88: #{frdb_forward.1} parent=85 // pred_check_branch
          %1058 = sbr.rel (%p1056) target = $region90
        $region89: #{frdb_forward.1} parent=85 // pred_region
          %p1059 = scmp.lt.s32.totalorder %s23, 1
          %s1060 = scalar_select %p1059, %s23, 1
          %p1061 = scmp.lt.s32.totalorder %s24, 1
          %s1062 = scalar_select %p1061, %s24, 1
          %s1063 = smul.addr %s1060, 2
          %s1064 = sadd.s32 %s1062, %s1063
          %s1065 = smul.addr %s1064, 4
          %s1066 = scalar_lea.vmem %s4, %s1065
        $region90: #{frdb_forward.1} parent=85 // pred_fallthru
          _
        // Predicated region
        $region91: #{frdb_forward.1} parent=85 // pred_check
          %p1067 = pneg %p174
        $region92: #{frdb_forward.1} parent=85 // pred_check_branch
          %1069 = sbr.rel (%p1067) target = $region94
        $region93: #{frdb_forward.1} parent=85 // pred_region
          %p1070 = scmp.lt.s32.totalorder %s23, 1
          %s1071 = scalar_select %p1070, %s23, 1
          %p1072 = scmp.lt.s32.totalorder %s24, 1
          %s1073 = scalar_select %p1072, %s24, 1
          %s1074 = smul.addr %s1071, 2
          %s1075 = sadd.s32 %s1073, %s1074
          %s1076 = smul.addr %s1075, 4
          %s1077 = scalar_lea.vmem %s5, %s1076
        $region94: #{frdb_forward.1} parent=85 // pred_fallthru
          _
      $region86: #{frdb_forward.1} parent=5 // pred_fallthru
        _
    $region6: #{frdb_forward.1} parent=1 // loop_footer
      %s16 = sadd.s32 1, %s12
    $region7: #{frdb_forward.1} parent=1 // loop_footer_branch
      %11 = sbr.rel target = $region3
    $region8: #{frdb_forward.1} parent=1 // loop_exit
      _

</llo_original>
